<compile_context>
chip_gen: v7x
topology: tpu7x:2x2x1
jax: 0.10.0
libtpu: 0.0.40
codegen_flags: <defaults>
</compile_context>

<pallas_src>
import math
import functools

import jax
import jax.numpy as jnp
from jax import lax
from jax.experimental import pallas as pl
from jax.experimental.pallas import tpu as pltpu
from jax.scipy.special import erf


def _layer_norm(x, gamma, beta, eps=1e-5):
    # x: (rows, D) f32; gamma/beta: (1, D)
    mean = jnp.mean(x, axis=-1, keepdims=True)
    xc = x - mean
    var = jnp.mean(xc * xc, axis=-1, keepdims=True)
    return xc * lax.rsqrt(var + eps) * gamma + beta        # rsqrt -> EUP slot


def transformer_block_kernel(
    x_ref,                      # (1, S, D)   full sequence of one batch element
    wq_ref, wk_ref, wv_ref,     # (D, D) bf16  (qkv_proj columns, unsplit, no bias)
    wo_ref,                     # (D, D) bf16  (out_proj, (in, out))
    bo_ref,                     # (1, D) f32
    g1_ref, be1_ref,            # (1, D) LayerNorm1
    g2_ref, be2_ref,            # (1, D) LayerNorm2
    w1_ref, b1_ref,             # (D, d_ff) bf16, (1, d_ff) f32
    w2_ref, b2_ref,             # (d_ff, D) bf16, (1, D)    f32
    o_ref,                      # (1, TQ, D)
    k_sc, v_sc,                 # VMEM scratch (H, S, dk)  bf16
    q_sc,                       # VMEM scratch (H, TQ, dk) bf16
    ctx_sc,                     # VMEM scratch (TQ, D)     bf16
    *, n_heads, tq, exp_dtype,
):
    S = x_ref.shape[1]
    D = x_ref.shape[2]
    dk = D // n_heads
    scale = 1.0 / math.sqrt(dk)
    qi = pl.program_id(1)
    bf16 = jnp.bfloat16

    # ---- K / V for the whole sequence: computed once per batch element ----
    @pl.when(qi == 0)
    def _():
        x_full = x_ref[0].astype(jnp.float32)                                   # (S, D)
        xn = _layer_norm(x_full, g1_ref[...], be1_ref[...]).astype(bf16)
        # Wide (S, D) @ (D, D) projections — full-width N on the MXU.
        k_full = jnp.dot(xn, wk_ref[...],
                         preferred_element_type=jnp.float32).astype(bf16)       # (S, D)
        v_full = jnp.dot(xn, wv_ref[...],
                         preferred_element_type=jnp.float32).astype(bf16)       # (S, D)
        # Split heads with static lane slices into per-head scratch (manual,
        # bounded relayout through VMEM — once per batch element).
        for h in range(n_heads):
            sl = slice(h * dk, (h + 1) * dk)
            k_sc[h] = k_full[:, sl]
            v_sc[h] = v_full[:, sl]
        # TODO(synk): for dk < 128, pack two heads per 128 lanes to avoid
        # half-empty vregs in the K/V scratch.

    # ---- query tile (pre-LN 1 + full-width Q projection) ----
    q_start = pl.multiple_of(qi * tq, tq)
    x_q = x_ref[0, pl.ds(q_start, tq), :].astype(jnp.float32)                   # (TQ, D)
    xq_n = _layer_norm(x_q, g1_ref[...], be1_ref[...])
    q2 = jnp.dot((xq_n * scale).astype(bf16), wq_ref[...],
                 preferred_element_type=jnp.float32).astype(bf16)               # (TQ, D)
    for h in range(n_heads):
        q_sc[h] = q2[:, h * dk:(h + 1) * dk]

    # ---- batched multi-head attention (non-causal, no mask) ----
    s = jnp.einsum('hqd,hkd->hqk', q_sc[...], k_sc[...],
                   preferred_element_type=jnp.float32)                          # (H, TQ, S)
    m = jnp.max(s, axis=-1, keepdims=True)
    p = jnp.exp((s - m).astype(exp_dtype))       # bf16 exp on v6e/v7x (EUP 2x), f32 on v5e
    denom = jnp.sum(p.astype(jnp.float32), axis=-1, keepdims=True)              # f32 accum
    ctx = jnp.einsum('hqk,hkd->hqd', p.astype(bf16), v_sc[...],
                     preferred_element_type=jnp.float32)                        # (H, TQ, dk)
    ctx = ctx * pl.reciprocal(denom, approx=True)                               # post-normalize
    # TODO(synk): flash-style inner loop over key tiles (online max/sum) to cap
    # the (H, TQ, S) score temp for very long S on v7x's 64 MiB VMEM.

    # Merge heads back into a lane-dense (TQ, D) slab, then one wide out-proj.
    for h in range(n_heads):
        ctx_sc[:, h * dk:(h + 1) * dk] = ctx[h].astype(bf16)
    attn = jnp.dot(ctx_sc[...], wo_ref[...],
                   preferred_element_type=jnp.float32) + bo_ref[...]
    x1 = x_q + attn                                                             # residual 1

    # ---- pre-LN 2 + feed-forward (exact erf GELU, matches nn.GELU()) ----
    x2 = _layer_norm(x1, g2_ref[...], be2_ref[...])
    h = jnp.dot(x2.astype(bf16), w1_ref[...],
                preferred_element_type=jnp.float32) + b1_ref[...]
    h = 0.5 * h * (1.0 + erf(h * (1.0 / math.sqrt(2.0))))
    y = jnp.dot(h.astype(bf16), w2_ref[...],
                preferred_element_type=jnp.float32) + b2_ref[...]

    o_ref[0] = (x1 + y).astype(o_ref.dtype)                                     # residual 2
    # TODO(synk): attn_mask path (masked_fill before softmax) not wired in; the
    # module is exercised with attn_mask=None.  Dropout is identity (inference).
    # TODO(synk): d_ff-tiled FFN with w1/w2 streamed from HBM (pl.ANY +
    # emit_pipeline) for very large d_ff on v7x's 64 MiB VMEM.


def optimized_transformer_block(x, params, *, n_heads):
    B, S, D = x.shape
    assert D % n_heads == 0, "d_model must be divisible by n_heads"
    dk = D // n_heads
    d_ff = params["w1"].shape[1]
    bf16 = jnp.bfloat16

    # ---- device-generation knobs ----
    try:
        kind = jax.devices()[0].device_kind.lower()
    except Exception:
        kind = ""
    newer_gen = any(t in kind for t in ("v6", "v7", "7x"))     # bf16 EUP available
    exp_dtype = bf16 if newer_gen else jnp.float32
    try:
        phys_vmem = int(pltpu.get_tpu_info().vmem_capacity_bytes)
    except Exception:
        phys_vmem = (128 if any(t in kind for t in ("v5", "v6")) else 64) * 2 ** 20
    vmem_cap = int(phys_vmem * 0.85)        # leave headroom for compiler scratch

    # ---- query-tile size (multiple of 8; sized against a score-temp budget) ----
    def _rup(n, m):
        return -(-n // m) * m

    score_budget = phys_vmem // 4           # budget for the f32 (H, TQ, S) score temp
    tq = None
    for t in (512, 256, 128):
        if S % t == 0 and 4 * n_heads * t * _rup(S, 128) <= score_budget:
            tq = t
            break
    if tq is None:
        t0 = min(S, 128) - (min(S, 128) % 8)
        for t in range(t0, 7, -8):
            if S % t == 0:
                tq = t
                break
    if tq is None:
        tq = S                              # full-extent block (legal for odd S)
    nq = S // tq

    # ---- weights: (in, out) layout, bf16, no per-head split ----
    w_qkv = params["w_qkv"]                                   # (D, 3D): cols = which*D + h*dk + d
    w_q = w_qkv[:, 0:D].astype(bf16)
    w_k = w_qkv[:, D:2 * D].astype(bf16)
    w_v = w_qkv[:, 2 * D:3 * D].astype(bf16)
    w_o = params["w_o"].astype(bf16)
    w1 = params["w1"].astype(bf16)
    w2 = params["w2"].astype(bf16)

    # ---- VMEM working-set estimate (single-counted, layout-padded) ----
    D_p, dff_p, dk_p = _rup(D, 128), _rup(d_ff, 128), _rup(dk, 128)
    S_l, S_s, tq_s = _rup(S, 128), _rup(S, 16), _rup(tq, 16)
    est = 0
    est += 2 * 4 * _rup(S, 8) * D_p                       # x block (f32), double-buffered
    est += 2 * 4 * _rup(tq, 8) * D_p                      # out block (f32), double-buffered
    est += 2 * 2 * (4 * D_p * D_p + 2 * D_p * dff_p)      # bf16 weights, double-buffered
    est += 2 * n_heads * (2 * S_s + tq_s) * dk_p          # K/V/Q scratch (bf16)
    est += 2 * tq_s * D_p                                 # ctx scratch (bf16)
    est += (4 + (2 if newer_gen else 4) + 2) * n_heads * _rup(tq, 8) * S_l   # scores + probs
    est += 4 * n_heads * _rup(tq, 8) * dk_p               # ctx f32
    est += 6 * _rup(tq, 8) * dff_p                        # FFN hidden (f32 + bf16)
    est += 24 * max(_rup(S, 8), _rup(tq, 8)) * D_p        # LN / projection / misc temps
    vmem_limit = min(max(int(est * 1.25), 32 * 2 ** 20), vmem_cap)

    def const_spec(arr):
        nd = arr.ndim
        return pl.BlockSpec(arr.shape, lambda *_, nd=nd: (0,) * nd)
    # TODO(synk): single-buffer constant-index operands (pipeline_mode=pl.Buffered(1))
    # once verified on the target jax version; halves resident weight footprint.

    kernel = functools.partial(transformer_block_kernel,
                               n_heads=n_heads, tq=tq, exp_dtype=exp_dtype)
    return pl.pallas_call(
        kernel,
        out_shape=jax.ShapeDtypeStruct((B, S, D), x.dtype),
        grid=(B, nq),
        in_specs=[
            pl.BlockSpec((1, S, D), lambda b, qi: (b, 0, 0)),   # x: full seq per batch elem
            const_spec(w_q), const_spec(w_k), const_spec(w_v),
            const_spec(w_o), const_spec(params["b_o"]),
            const_spec(params["g1"]), const_spec(params["be1"]),
            const_spec(params["g2"]), const_spec(params["be2"]),
            const_spec(w1), const_spec(params["b1"]),
            const_spec(w2), const_spec(params["b2"]),
        ],
        out_specs=pl.BlockSpec((1, tq, D), lambda b, qi: (b, qi, 0)),
        scratch_shapes=[
            pltpu.VMEM((n_heads, S, dk), bf16),                 # K (per batch element)
            pltpu.VMEM((n_heads, S, dk), bf16),                 # V
            pltpu.VMEM((n_heads, tq, dk), bf16),                # Q (per tile)
            pltpu.VMEM((tq, D), bf16),                          # merged-head context
        ],
        compiler_params=pltpu.CompilerParams(
            dimension_semantics=("parallel", "arbitrary"),
            vmem_limit_bytes=vmem_limit,
        ),
    )(
        x,
        w_q, w_k, w_v, w_o, params["b_o"],
        params["g1"], params["be1"], params["g2"], params["be2"],
        w1, params["b1"], w2, params["b2"],
    )


def init_params(key, d_model, d_ff):
    ks = jax.random.split(key, 6)
    scale = 0.02
    # weights are stored already transposed to (in, out)
    return {
        "w_qkv": scale * jax.random.normal(ks[0], (d_model, 3 * d_model), jnp.float32),
        "w_o":   scale * jax.random.normal(ks[1], (d_model, d_model), jnp.float32),
        "b_o":   scale * jax.random.normal(ks[2], (1, d_model), jnp.float32),
        "g1":    jnp.ones((1, d_model), jnp.float32),
        "be1":   jnp.zeros((1, d_model), jnp.float32),
        "g2":    jnp.ones((1, d_model), jnp.float32),
        "be2":   jnp.zeros((1, d_model), jnp.float32),
        "w1":    scale * jax.random.normal(ks[3], (d_model, d_ff), jnp.float32),
        "b1":    scale * jax.random.normal(ks[4], (1, d_ff), jnp.float32),
        "w2":    scale * jax.random.normal(ks[5], (d_ff, d_model), jnp.float32),
        "b2":    jnp.zeros((1, d_model), jnp.float32),
    }


def _reference_block(x, params, *, n_heads):
    # Pure-JAX f32 reference matching the PyTorch module (inference mode).
    B, S, D = x.shape
    dk = D // n_heads

    def ln(v, g, b):
        mu = v.mean(-1, keepdims=True)
        var = ((v - mu) ** 2).mean(-1, keepdims=True)
        return (v - mu) / jnp.sqrt(var + 1e-5) * g + b

    xn = ln(x, params["g1"], params["be1"])
    qkv = xn @ params["w_qkv"]
    qkv = qkv.reshape(B, S, 3, n_heads, dk).transpose(2, 0, 3, 1, 4)
    q, k, v = qkv[0], qkv[1], qkv[2]                          # (B, H, S, dk)
    s = jnp.einsum('bhqd,bhkd->bhqk', q, k) / math.sqrt(dk)
    a = jax.nn.softmax(s, axis=-1)
    o = jnp.einsum('bhqk,bhkd->bhqd', a, v)
    o = o.transpose(0, 2, 1, 3).reshape(B, S, D)
    attn = o @ params["w_o"] + params["b_o"]
    x1 = x + attn
    x2 = ln(x1, params["g2"], params["be2"])
    h = x2 @ params["w1"] + params["b1"]
    h = 0.5 * h * (1.0 + erf(h / math.sqrt(2.0)))
    y = h @ params["w2"] + params["b2"]
    return x1 + y


if __name__ == "__main__":
    B, S, D, H, D_FF = 2, 8, 32, 4, 64
    key = jax.random.PRNGKey(0)
    kx, kp = jax.random.split(key)
    x = jax.random.normal(kx, (B, S, D), jnp.float32)
    params = init_params(kp, D, D_FF)

    out = optimized_transformer_block(x, params, n_heads=H)
    jax.block_until_ready(out)
    assert out.shape == (B, S, D) and out.dtype == jnp.float32

    ref = _reference_block(x, params, n_heads=H)
    err = float(jnp.max(jnp.abs(out - ref)))
    assert err < 5e-2, f"max abs error too large: {err}"
    print("KERNEL_OK")
</pallas_src>

<mosaic_0001>
module attributes {stable_mosaic.version = 11 : i64} {
  func.func @transformer_block_kernel(%arg0: i32, %arg1: i32, %arg2: memref<1x8x32xf32, #tpu.memory_space<vmem>>, %arg3: memref<32x32xbf16, #tpu.memory_space<vmem>>, %arg4: memref<32x32xbf16, #tpu.memory_space<vmem>>, %arg5: memref<32x32xbf16, #tpu.memory_space<vmem>>, %arg6: memref<32x32xbf16, #tpu.memory_space<vmem>>, %arg7: memref<1x32xf32, #tpu.memory_space<vmem>>, %arg8: memref<1x32xf32, #tpu.memory_space<vmem>>, %arg9: memref<1x32xf32, #tpu.memory_space<vmem>>, %arg10: memref<1x32xf32, #tpu.memory_space<vmem>>, %arg11: memref<1x32xf32, #tpu.memory_space<vmem>>, %arg12: memref<32x64xbf16, #tpu.memory_space<vmem>>, %arg13: memref<1x64xf32, #tpu.memory_space<vmem>>, %arg14: memref<64x32xbf16, #tpu.memory_space<vmem>>, %arg15: memref<1x32xf32, #tpu.memory_space<vmem>>, %arg16: memref<1x8x32xf32, #tpu.memory_space<vmem>>, %arg17: memref<4x8x8xbf16, #tpu.memory_space<vmem>>, %arg18: memref<4x8x8xbf16, #tpu.memory_space<vmem>>, %arg19: memref<4x8x8xbf16, #tpu.memory_space<vmem>>, %arg20: memref<8x32xbf16, #tpu.memory_space<vmem>>) attributes {dimension_semantics = [#tpu.dimension_semantics<parallel>, #tpu.dimension_semantics<arbitrary>], iteration_bounds = array<i64: 2, 1>, scalar_prefetch = 0 : i64, scratch_operands = 4 : i64, tpu.core_type = #tpu.core_type<tc>, window_params = [{transform_indices = @transform_0, window_bounds = array<i64: 1, 8, 32>}, {pipeline_mode = #tpu.pipeline_mode<synchronous>, transform_indices = @transform_1, window_bounds = array<i64: 32, 32>}, {pipeline_mode = #tpu.pipeline_mode<synchronous>, transform_indices = @transform_2, window_bounds = array<i64: 32, 32>}, {pipeline_mode = #tpu.pipeline_mode<synchronous>, transform_indices = @transform_3, window_bounds = array<i64: 32, 32>}, {pipeline_mode = #tpu.pipeline_mode<synchronous>, transform_indices = @transform_4, window_bounds = array<i64: 32, 32>}, {pipeline_mode = #tpu.pipeline_mode<synchronous>, transform_indices = @transform_5, window_bounds = array<i64: 1, 32>}, {pipeline_mode = #tpu.pipeline_mode<synchronous>, transform_indices = @transform_6, window_bounds = array<i64: 1, 32>}, {pipeline_mode = #tpu.pipeline_mode<synchronous>, transform_indices = @transform_7, window_bounds = array<i64: 1, 32>}, {pipeline_mode = #tpu.pipeline_mode<synchronous>, transform_indices = @transform_8, window_bounds = array<i64: 1, 32>}, {pipeline_mode = #tpu.pipeline_mode<synchronous>, transform_indices = @transform_9, window_bounds = array<i64: 1, 32>}, {pipeline_mode = #tpu.pipeline_mode<synchronous>, transform_indices = @transform_10, window_bounds = array<i64: 32, 64>}, {pipeline_mode = #tpu.pipeline_mode<synchronous>, transform_indices = @transform_11, window_bounds = array<i64: 1, 64>}, {pipeline_mode = #tpu.pipeline_mode<synchronous>, transform_indices = @transform_12, window_bounds = array<i64: 64, 32>}, {pipeline_mode = #tpu.pipeline_mode<synchronous>, transform_indices = @transform_13, window_bounds = array<i64: 1, 32>}, {transform_indices = @transform_14, window_bounds = array<i64: 1, 8, 32>}]} {
    %c0_i32 = arith.constant 0 : i32
    %0 = arith.cmpi eq, %arg1, %c0_i32 : i32
    %1 = arith.extui %0 : i1 to i32
    %c0_i32_0 = arith.constant 0 : i32
    %2 = arith.cmpi ne, %1, %c0_i32_0 : i32
    scf.if %2 {
      %c0_73 = arith.constant 0 : index
      %c0_74 = arith.constant 0 : index
      %c0_75 = arith.constant 0 : index
      %137 = vector.load %arg2[%c0_73, %c0_74, %c0_75] : memref<1x8x32xf32, #tpu.memory_space<vmem>>, vector<1x8x32xf32>
      %138 = vector.shape_cast %137 : vector<1x8x32xf32> to vector<8x32xf32>
      %c0_76 = arith.constant 0 : index
      %c0_77 = arith.constant 0 : index
      %139 = vector.load %arg8[%c0_76, %c0_77] : memref<1x32xf32, #tpu.memory_space<vmem>>, vector<1x32xf32>
      %c0_78 = arith.constant 0 : index
      %c0_79 = arith.constant 0 : index
      %140 = vector.load %arg9[%c0_78, %c0_79] : memref<1x32xf32, #tpu.memory_space<vmem>>, vector<1x32xf32>
      %cst_80 = arith.constant dense<0.000000e+00> : vector<8xf32>
      %141 = vector.multi_reduction <add>, %138, %cst_80 [1] : vector<8x32xf32> to vector<8xf32>
      %142 = vector.shape_cast %141 : vector<8xf32> to vector<8x1xf32>
      %cst_81 = arith.constant 3.200000e+01 : f32
      %143 = vector.broadcast %cst_81 : f32 to vector<8x1xf32>
      %144 = arith.divf %142, %143 : vector<8x1xf32>
      %145 = vector.broadcast %144 : vector<8x1xf32> to vector<8x32xf32>
      %146 = arith.subf %138, %145 : vector<8x32xf32>
      %147 = arith.mulf %146, %146 : vector<8x32xf32>
      %cst_82 = arith.constant dense<0.000000e+00> : vector<8xf32>
      %148 = vector.multi_reduction <add>, %147, %cst_82 [1] : vector<8x32xf32> to vector<8xf32>
      %149 = vector.shape_cast %148 : vector<8xf32> to vector<8x1xf32>
      %cst_83 = arith.constant 3.200000e+01 : f32
      %150 = vector.broadcast %cst_83 : f32 to vector<8x1xf32>
      %151 = arith.divf %149, %150 : vector<8x1xf32>
      %cst_84 = arith.constant 9.99999974E-6 : f32
      %152 = vector.broadcast %cst_84 : f32 to vector<8x1xf32>
      %153 = arith.addf %151, %152 : vector<8x1xf32>
      %154 = math.rsqrt %153 : vector<8x1xf32>
      %155 = vector.broadcast %154 : vector<8x1xf32> to vector<8x32xf32>
      %156 = arith.mulf %146, %155 : vector<8x32xf32>
      %157 = vector.broadcast %139 : vector<1x32xf32> to vector<8x32xf32>
      %158 = arith.mulf %156, %157 : vector<8x32xf32>
      %159 = vector.broadcast %140 : vector<1x32xf32> to vector<8x32xf32>
      %160 = arith.addf %158, %159 : vector<8x32xf32>
      %161 = arith.truncf %160 : vector<8x32xf32> to vector<8x32xbf16>
      %c0_85 = arith.constant 0 : index
      %c0_86 = arith.constant 0 : index
      %162 = vector.load %arg4[%c0_85, %c0_86] : memref<32x32xbf16, #tpu.memory_space<vmem>>, vector<32x32xbf16>
      %cst_87 = arith.constant dense<0.000000e+00> : vector<8x32xf32>
      %163 = tpu.matmul %161, %162, %cst_87 {dimension_numbers = #tpu.dot_dimension_numbers<[1], [0], [0], [1], [0, 0, 1, 1], [], []>} : vector<8x32xbf16>, vector<32x32xbf16>, vector<8x32xf32> -> vector<8x32xf32>
      %164 = arith.truncf %163 : vector<8x32xf32> to vector<8x32xbf16>
      %c0_88 = arith.constant 0 : index
      %c0_89 = arith.constant 0 : index
      %165 = vector.load %arg5[%c0_88, %c0_89] : memref<32x32xbf16, #tpu.memory_space<vmem>>, vector<32x32xbf16>
      %cst_90 = arith.constant dense<0.000000e+00> : vector<8x32xf32>
      %166 = tpu.matmul %161, %165, %cst_90 {dimension_numbers = #tpu.dot_dimension_numbers<[1], [0], [0], [1], [0, 0, 1, 1], [], []>} : vector<8x32xbf16>, vector<32x32xbf16>, vector<8x32xf32> -> vector<8x32xf32>
      %167 = arith.truncf %166 : vector<8x32xf32> to vector<8x32xbf16>
      %168 = vector.extract_strided_slice %164 {offsets = [0, 0], sizes = [8, 8], strides = [1, 1]} : vector<8x32xbf16> to vector<8x8xbf16>
      %c0_91 = arith.constant 0 : index
      %c0_92 = arith.constant 0 : index
      %c0_93 = arith.constant 0 : index
      %169 = vector.load %arg17[%c0_91, %c0_92, %c0_93] : memref<4x8x8xbf16, #tpu.memory_space<vmem>>, vector<1x8x8xbf16>
      %170 = vector.shape_cast %169 : vector<1x8x8xbf16> to vector<8x8xbf16>
      %171 = vector.shape_cast %168 : vector<8x8xbf16> to vector<1x8x8xbf16>
      tpu.vector_store %arg17[%c0_91, %c0_92, %c0_93], %171 {strides = array<i32>} : memref<4x8x8xbf16, #tpu.memory_space<vmem>>, vector<1x8x8xbf16>,
      %172 = vector.extract_strided_slice %167 {offsets = [0, 0], sizes = [8, 8], strides = [1, 1]} : vector<8x32xbf16> to vector<8x8xbf16>
      %c0_94 = arith.constant 0 : index
      %c0_95 = arith.constant 0 : index
      %c0_96 = arith.constant 0 : index
      %173 = vector.load %arg18[%c0_94, %c0_95, %c0_96] : memref<4x8x8xbf16, #tpu.memory_space<vmem>>, vector<1x8x8xbf16>
      %174 = vector.shape_cast %173 : vector<1x8x8xbf16> to vector<8x8xbf16>
      %175 = vector.shape_cast %172 : vector<8x8xbf16> to vector<1x8x8xbf16>
      tpu.vector_store %arg18[%c0_94, %c0_95, %c0_96], %175 {strides = array<i32>} : memref<4x8x8xbf16, #tpu.memory_space<vmem>>, vector<1x8x8xbf16>,
      %176 = vector.extract_strided_slice %164 {offsets = [0, 8], sizes = [8, 8], strides = [1, 1]} : vector<8x32xbf16> to vector<8x8xbf16>
      %c1_97 = arith.constant 1 : index
      %c0_98 = arith.constant 0 : index
      %c0_99 = arith.constant 0 : index
      %177 = vector.load %arg17[%c1_97, %c0_98, %c0_99] : memref<4x8x8xbf16, #tpu.memory_space<vmem>>, vector<1x8x8xbf16>
      %178 = vector.shape_cast %177 : vector<1x8x8xbf16> to vector<8x8xbf16>
      %179 = vector.shape_cast %176 : vector<8x8xbf16> to vector<1x8x8xbf16>
      tpu.vector_store %arg17[%c1_97, %c0_98, %c0_99], %179 {strides = array<i32>} : memref<4x8x8xbf16, #tpu.memory_space<vmem>>, vector<1x8x8xbf16>,
      %180 = vector.extract_strided_slice %167 {offsets = [0, 8], sizes = [8, 8], strides = [1, 1]} : vector<8x32xbf16> to vector<8x8xbf16>
      %c1_100 = arith.constant 1 : index
      %c0_101 = arith.constant 0 : index
      %c0_102 = arith.constant 0 : index
      %181 = vector.load %arg18[%c1_100, %c0_101, %c0_102] : memref<4x8x8xbf16, #tpu.memory_space<vmem>>, vector<1x8x8xbf16>
      %182 = vector.shape_cast %181 : vector<1x8x8xbf16> to vector<8x8xbf16>
      %183 = vector.shape_cast %180 : vector<8x8xbf16> to vector<1x8x8xbf16>
      tpu.vector_store %arg18[%c1_100, %c0_101, %c0_102], %183 {strides = array<i32>} : memref<4x8x8xbf16, #tpu.memory_space<vmem>>, vector<1x8x8xbf16>,
      %184 = vector.extract_strided_slice %164 {offsets = [0, 16], sizes = [8, 8], strides = [1, 1]} : vector<8x32xbf16> to vector<8x8xbf16>
      %c2_103 = arith.constant 2 : index
      %c0_104 = arith.constant 0 : index
      %c0_105 = arith.constant 0 : index
      %185 = vector.load %arg17[%c2_103, %c0_104, %c0_105] : memref<4x8x8xbf16, #tpu.memory_space<vmem>>, vector<1x8x8xbf16>
      %186 = vector.shape_cast %185 : vector<1x8x8xbf16> to vector<8x8xbf16>
      %187 = vector.shape_cast %184 : vector<8x8xbf16> to vector<1x8x8xbf16>
      tpu.vector_store %arg17[%c2_103, %c0_104, %c0_105], %187 {strides = array<i32>} : memref<4x8x8xbf16, #tpu.memory_space<vmem>>, vector<1x8x8xbf16>,
      %188 = vector.extract_strided_slice %167 {offsets = [0, 16], sizes = [8, 8], strides = [1, 1]} : vector<8x32xbf16> to vector<8x8xbf16>
      %c2_106 = arith.constant 2 : index
      %c0_107 = arith.constant 0 : index
      %c0_108 = arith.constant 0 : index
      %189 = vector.load %arg18[%c2_106, %c0_107, %c0_108] : memref<4x8x8xbf16, #tpu.memory_space<vmem>>, vector<1x8x8xbf16>
      %190 = vector.shape_cast %189 : vector<1x8x8xbf16> to vector<8x8xbf16>
      %191 = vector.shape_cast %188 : vector<8x8xbf16> to vector<1x8x8xbf16>
      tpu.vector_store %arg18[%c2_106, %c0_107, %c0_108], %191 {strides = array<i32>} : memref<4x8x8xbf16, #tpu.memory_space<vmem>>, vector<1x8x8xbf16>,
      %192 = vector.extract_strided_slice %164 {offsets = [0, 24], sizes = [8, 8], strides = [1, 1]} : vector<8x32xbf16> to vector<8x8xbf16>
      %c3_109 = arith.constant 3 : index
      %c0_110 = arith.constant 0 : index
      %c0_111 = arith.constant 0 : index
      %193 = vector.load %arg17[%c3_109, %c0_110, %c0_111] : memref<4x8x8xbf16, #tpu.memory_space<vmem>>, vector<1x8x8xbf16>
      %194 = vector.shape_cast %193 : vector<1x8x8xbf16> to vector<8x8xbf16>
      %195 = vector.shape_cast %192 : vector<8x8xbf16> to vector<1x8x8xbf16>
      tpu.vector_store %arg17[%c3_109, %c0_110, %c0_111], %195 {strides = array<i32>} : memref<4x8x8xbf16, #tpu.memory_space<vmem>>, vector<1x8x8xbf16>,
      %196 = vector.extract_strided_slice %167 {offsets = [0, 24], sizes = [8, 8], strides = [1, 1]} : vector<8x32xbf16> to vector<8x8xbf16>
      %c3_112 = arith.constant 3 : index
      %c0_113 = arith.constant 0 : index
      %c0_114 = arith.constant 0 : index
      %197 = vector.load %arg18[%c3_112, %c0_113, %c0_114] : memref<4x8x8xbf16, #tpu.memory_space<vmem>>, vector<1x8x8xbf16>
      %198 = vector.shape_cast %197 : vector<1x8x8xbf16> to vector<8x8xbf16>
      %199 = vector.shape_cast %196 : vector<8x8xbf16> to vector<1x8x8xbf16>
      tpu.vector_store %arg18[%c3_112, %c0_113, %c0_114], %199 {strides = array<i32>} : memref<4x8x8xbf16, #tpu.memory_space<vmem>>, vector<1x8x8xbf16>,
    } else {
    }
    %c8_i32 = arith.constant 8 : i32
    %3 = arith.muli %arg1, %c8_i32 : i32
    %4 = tpu.assume_multiple %3, 8 : i32
    %c0 = arith.constant 0 : index
    %5 = arith.index_cast %4 : i32 to index
    %c0_1 = arith.constant 0 : index
    %6 = vector.load %arg2[%c0, %5, %c0_1] : memref<1x8x32xf32, #tpu.memory_space<vmem>>, vector<1x8x32xf32>
    %7 = vector.shape_cast %6 : vector<1x8x32xf32> to vector<8x32xf32>
    %c0_2 = arith.constant 0 : index
    %c0_3 = arith.constant 0 : index
    %8 = vector.load %arg8[%c0_2, %c0_3] : memref<1x32xf32, #tpu.memory_space<vmem>>, vector<1x32xf32>
    %c0_4 = arith.constant 0 : index
    %c0_5 = arith.constant 0 : index
    %9 = vector.load %arg9[%c0_4, %c0_5] : memref<1x32xf32, #tpu.memory_space<vmem>>, vector<1x32xf32>
    %cst = arith.constant dense<0.000000e+00> : vector<8xf32>
    %10 = vector.multi_reduction <add>, %7, %cst [1] : vector<8x32xf32> to vector<8xf32>
    %11 = vector.shape_cast %10 : vector<8xf32> to vector<8x1xf32>
    %cst_6 = arith.constant 3.200000e+01 : f32
    %12 = vector.broadcast %cst_6 : f32 to vector<8x1xf32>
    %13 = arith.divf %11, %12 : vector<8x1xf32>
    %14 = vector.broadcast %13 : vector<8x1xf32> to vector<8x32xf32>
    %15 = arith.subf %7, %14 : vector<8x32xf32>
    %16 = arith.mulf %15, %15 : vector<8x32xf32>
    %cst_7 = arith.constant dense<0.000000e+00> : vector<8xf32>
    %17 = vector.multi_reduction <add>, %16, %cst_7 [1] : vector<8x32xf32> to vector<8xf32>
    %18 = vector.shape_cast %17 : vector<8xf32> to vector<8x1xf32>
    %cst_8 = arith.constant 3.200000e+01 : f32
    %19 = vector.broadcast %cst_8 : f32 to vector<8x1xf32>
    %20 = arith.divf %18, %19 : vector<8x1xf32>
    %cst_9 = arith.constant 9.99999974E-6 : f32
    %21 = vector.broadcast %cst_9 : f32 to vector<8x1xf32>
    %22 = arith.addf %20, %21 : vector<8x1xf32>
    %23 = math.rsqrt %22 : vector<8x1xf32>
    %24 = vector.broadcast %23 : vector<8x1xf32> to vector<8x32xf32>
    %25 = arith.mulf %15, %24 : vector<8x32xf32>
    %26 = vector.broadcast %8 : vector<1x32xf32> to vector<8x32xf32>
    %27 = arith.mulf %25, %26 : vector<8x32xf32>
    %28 = vector.broadcast %9 : vector<1x32xf32> to vector<8x32xf32>
    %29 = arith.addf %27, %28 : vector<8x32xf32>
    %cst_10 = arith.constant 0.353553385 : f32
    %30 = vector.broadcast %cst_10 : f32 to vector<8x32xf32>
    %31 = arith.mulf %29, %30 : vector<8x32xf32>
    %32 = arith.truncf %31 : vector<8x32xf32> to vector<8x32xbf16>
    %c0_11 = arith.constant 0 : index
    %c0_12 = arith.constant 0 : index
    %33 = vector.load %arg3[%c0_11, %c0_12] : memref<32x32xbf16, #tpu.memory_space<vmem>>, vector<32x32xbf16>
    %cst_13 = arith.constant dense<0.000000e+00> : vector<8x32xf32>
    %34 = tpu.matmul %32, %33, %cst_13 {dimension_numbers = #tpu.dot_dimension_numbers<[1], [0], [0], [1], [0, 0, 1, 1], [], []>} : vector<8x32xbf16>, vector<32x32xbf16>, vector<8x32xf32> -> vector<8x32xf32>
    %35 = arith.truncf %34 : vector<8x32xf32> to vector<8x32xbf16>
    %36 = vector.extract_strided_slice %35 {offsets = [0, 0], sizes = [8, 8], strides = [1, 1]} : vector<8x32xbf16> to vector<8x8xbf16>
    %c0_14 = arith.constant 0 : index
    %c0_15 = arith.constant 0 : index
    %c0_16 = arith.constant 0 : index
    %37 = vector.load %arg19[%c0_14, %c0_15, %c0_16] : memref<4x8x8xbf16, #tpu.memory_space<vmem>>, vector<1x8x8xbf16>
    %38 = vector.shape_cast %37 : vector<1x8x8xbf16> to vector<8x8xbf16>
    %39 = vector.shape_cast %36 : vector<8x8xbf16> to vector<1x8x8xbf16>
    tpu.vector_store %arg19[%c0_14, %c0_15, %c0_16], %39 {strides = array<i32>} : memref<4x8x8xbf16, #tpu.memory_space<vmem>>, vector<1x8x8xbf16>,
    %40 = vector.extract_strided_slice %35 {offsets = [0, 8], sizes = [8, 8], strides = [1, 1]} : vector<8x32xbf16> to vector<8x8xbf16>
    %c1 = arith.constant 1 : index
    %c0_17 = arith.constant 0 : index
    %c0_18 = arith.constant 0 : index
    %41 = vector.load %arg19[%c1, %c0_17, %c0_18] : memref<4x8x8xbf16, #tpu.memory_space<vmem>>, vector<1x8x8xbf16>
    %42 = vector.shape_cast %41 : vector<1x8x8xbf16> to vector<8x8xbf16>
    %43 = vector.shape_cast %40 : vector<8x8xbf16> to vector<1x8x8xbf16>
    tpu.vector_store %arg19[%c1, %c0_17, %c0_18], %43 {strides = array<i32>} : memref<4x8x8xbf16, #tpu.memory_space<vmem>>, vector<1x8x8xbf16>,
    %44 = vector.extract_strided_slice %35 {offsets = [0, 16], sizes = [8, 8], strides = [1, 1]} : vector<8x32xbf16> to vector<8x8xbf16>
    %c2 = arith.constant 2 : index
    %c0_19 = arith.constant 0 : index
    %c0_20 = arith.constant 0 : index
    %45 = vector.load %arg19[%c2, %c0_19, %c0_20] : memref<4x8x8xbf16, #tpu.memory_space<vmem>>, vector<1x8x8xbf16>
    %46 = vector.shape_cast %45 : vector<1x8x8xbf16> to vector<8x8xbf16>
    %47 = vector.shape_cast %44 : vector<8x8xbf16> to vector<1x8x8xbf16>
    tpu.vector_store %arg19[%c2, %c0_19, %c0_20], %47 {strides = array<i32>} : memref<4x8x8xbf16, #tpu.memory_space<vmem>>, vector<1x8x8xbf16>,
    %48 = vector.extract_strided_slice %35 {offsets = [0, 24], sizes = [8, 8], strides = [1, 1]} : vector<8x32xbf16> to vector<8x8xbf16>
    %c3 = arith.constant 3 : index
    %c0_21 = arith.constant 0 : index
    %c0_22 = arith.constant 0 : index
    %49 = vector.load %arg19[%c3, %c0_21, %c0_22] : memref<4x8x8xbf16, #tpu.memory_space<vmem>>, vector<1x8x8xbf16>
    %50 = vector.shape_cast %49 : vector<1x8x8xbf16> to vector<8x8xbf16>
    %51 = vector.shape_cast %48 : vector<8x8xbf16> to vector<1x8x8xbf16>
    tpu.vector_store %arg19[%c3, %c0_21, %c0_22], %51 {strides = array<i32>} : memref<4x8x8xbf16, #tpu.memory_space<vmem>>, vector<1x8x8xbf16>,
    %c0_23 = arith.constant 0 : index
    %c0_24 = arith.constant 0 : index
    %c0_25 = arith.constant 0 : index
    %52 = vector.load %arg19[%c0_23, %c0_24, %c0_25] : memref<4x8x8xbf16, #tpu.memory_space<vmem>>, vector<4x8x8xbf16>
    %c0_26 = arith.constant 0 : index
    %c0_27 = arith.constant 0 : index
    %c0_28 = arith.constant 0 : index
    %53 = vector.load %arg17[%c0_26, %c0_27, %c0_28] : memref<4x8x8xbf16, #tpu.memory_space<vmem>>, vector<4x8x8xbf16>
    "tpu.trace_start"() <{level = 10 : i32, message = "hqd,hkd->hqk"}> : () -> ()
    %cst_29 = arith.constant dense<0.000000e+00> : vector<4x8x8xf32>
    %54 = tpu.matmul %52, %53, %cst_29 {dimension_numbers = #tpu.dot_dimension_numbers<[2], [2], [1], [1], [0, 0, 0, 1, 1, 1], [0], [0]>} : vector<4x8x8xbf16>, vector<4x8x8xbf16>, vector<4x8x8xf32> -> vector<4x8x8xf32>
    "tpu.trace_stop"() : () -> ()
    %cst_30 = arith.constant dense<0xFF800000> : vector<4x8xf32>
    %55 = vector.multi_reduction <maximumf>, %54, %cst_30 [2] : vector<4x8x8xf32> to vector<4x8xf32>
    %56 = vector.shape_cast %55 : vector<4x8xf32> to vector<4x8x1xf32>
    %57 = vector.broadcast %56 : vector<4x8x1xf32> to vector<4x8x8xf32>
    %58 = arith.subf %54, %57 : vector<4x8x8xf32>
    %59 = math.exp %58 : vector<4x8x8xf32>
    %cst_31 = arith.constant dense<0.000000e+00> : vector<4x8xf32>
    %60 = vector.multi_reduction <add>, %59, %cst_31 [2] : vector<4x8x8xf32> to vector<4x8xf32>
    %61 = vector.shape_cast %60 : vector<4x8xf32> to vector<4x8x1xf32>
    %62 = arith.truncf %59 : vector<4x8x8xf32> to vector<4x8x8xbf16>
    %c0_32 = arith.constant 0 : index
    %c0_33 = arith.constant 0 : index
    %c0_34 = arith.constant 0 : index
    %63 = vector.load %arg18[%c0_32, %c0_33, %c0_34] : memref<4x8x8xbf16, #tpu.memory_space<vmem>>, vector<4x8x8xbf16>
    "tpu.trace_start"() <{level = 10 : i32, message = "hqk,hkd->hqd"}> : () -> ()
    %cst_35 = arith.constant dense<0.000000e+00> : vector<4x8x8xf32>
    %64 = tpu.matmul %62, %63, %cst_35 {dimension_numbers = #tpu.dot_dimension_numbers<[2], [1], [1], [2], [0, 0, 0, 1, 1, 2], [0], [0]>} : vector<4x8x8xbf16>, vector<4x8x8xbf16>, vector<4x8x8xf32> -> vector<4x8x8xf32>
    "tpu.trace_stop"() : () -> ()
    %65 = tpu.reciprocal %61 {approx = true} : vector<4x8x1xf32> -> vector<4x8x1xf32>
    %66 = vector.broadcast %65 : vector<4x8x1xf32> to vector<4x8x8xf32>
    %67 = arith.mulf %64, %66 : vector<4x8x8xf32>
    %68 = vector.extract_strided_slice %67 {offsets = [0, 0, 0], sizes = [1, 8, 8], strides = [1, 1, 1]} : vector<4x8x8xf32> to vector<1x8x8xf32>
    %69 = vector.shape_cast %68 : vector<1x8x8xf32> to vector<8x8xf32>
    %70 = arith.truncf %69 : vector<8x8xf32> to vector<8x8xbf16>
    %c0_36 = arith.constant 0 : index
    %c0_37 = arith.constant 0 : index
    %71 = vector.load %arg20[%c0_36, %c0_37] : memref<8x32xbf16, #tpu.memory_space<vmem>>, vector<8x8xbf16>
    tpu.vector_store %arg20[%c0_36, %c0_37], %70 {strides = array<i32>} : memref<8x32xbf16, #tpu.memory_space<vmem>>, vector<8x8xbf16>,
    %72 = vector.extract_strided_slice %67 {offsets = [1, 0, 0], sizes = [1, 8, 8], strides = [1, 1, 1]} : vector<4x8x8xf32> to vector<1x8x8xf32>
    %73 = vector.shape_cast %72 : vector<1x8x8xf32> to vector<8x8xf32>
    %74 = arith.truncf %73 : vector<8x8xf32> to vector<8x8xbf16>
    %c0_38 = arith.constant 0 : index
    %c8 = arith.constant 8 : index
    %75 = vector.load %arg20[%c0_38, %c8] : memref<8x32xbf16, #tpu.memory_space<vmem>>, vector<8x8xbf16>
    tpu.vector_store %arg20[%c0_38, %c8], %74 {strides = array<i32>} : memref<8x32xbf16, #tpu.memory_space<vmem>>, vector<8x8xbf16>,
    %76 = vector.extract_strided_slice %67 {offsets = [2, 0, 0], sizes = [1, 8, 8], strides = [1, 1, 1]} : vector<4x8x8xf32> to vector<1x8x8xf32>
    %77 = vector.shape_cast %76 : vector<1x8x8xf32> to vector<8x8xf32>
    %78 = arith.truncf %77 : vector<8x8xf32> to vector<8x8xbf16>
    %c0_39 = arith.constant 0 : index
    %c16 = arith.constant 16 : index
    %79 = vector.load %arg20[%c0_39, %c16] : memref<8x32xbf16, #tpu.memory_space<vmem>>, vector<8x8xbf16>
    tpu.vector_store %arg20[%c0_39, %c16], %78 {strides = array<i32>} : memref<8x32xbf16, #tpu.memory_space<vmem>>, vector<8x8xbf16>,
    %80 = vector.extract_strided_slice %67 {offsets = [3, 0, 0], sizes = [1, 8, 8], strides = [1, 1, 1]} : vector<4x8x8xf32> to vector<1x8x8xf32>
    %81 = vector.shape_cast %80 : vector<1x8x8xf32> to vector<8x8xf32>
    %82 = arith.truncf %81 : vector<8x8xf32> to vector<8x8xbf16>
    %c0_40 = arith.constant 0 : index
    %c24 = arith.constant 24 : index
    %83 = vector.load %arg20[%c0_40, %c24] : memref<8x32xbf16, #tpu.memory_space<vmem>>, vector<8x8xbf16>
    tpu.vector_store %arg20[%c0_40, %c24], %82 {strides = array<i32>} : memref<8x32xbf16, #tpu.memory_space<vmem>>, vector<8x8xbf16>,
    %c0_41 = arith.constant 0 : index
    %c0_42 = arith.constant 0 : index
    %84 = vector.load %arg20[%c0_41, %c0_42] : memref<8x32xbf16, #tpu.memory_space<vmem>>, vector<8x32xbf16>
    %c0_43 = arith.constant 0 : index
    %c0_44 = arith.constant 0 : index
    %85 = vector.load %arg6[%c0_43, %c0_44] : memref<32x32xbf16, #tpu.memory_space<vmem>>, vector<32x32xbf16>
    %cst_45 = arith.constant dense<0.000000e+00> : vector<8x32xf32>
    %86 = tpu.matmul %84, %85, %cst_45 {dimension_numbers = #tpu.dot_dimension_numbers<[1], [0], [0], [1], [0, 0, 1, 1], [], []>} : vector<8x32xbf16>, vector<32x32xbf16>, vector<8x32xf32> -> vector<8x32xf32>
    %c0_46 = arith.constant 0 : index
    %c0_47 = arith.constant 0 : index
    %87 = vector.load %arg7[%c0_46, %c0_47] : memref<1x32xf32, #tpu.memory_space<vmem>>, vector<1x32xf32>
    %88 = vector.broadcast %87 : vector<1x32xf32> to vector<8x32xf32>
    %89 = arith.addf %86, %88 : vector<8x32xf32>
    %90 = arith.addf %7, %89 : vector<8x32xf32>
    %c0_48 = arith.constant 0 : index
    %c0_49 = arith.constant 0 : index
    %91 = vector.load %arg10[%c0_48, %c0_49] : memref<1x32xf32, #tpu.memory_space<vmem>>, vector<1x32xf32>
    %c0_50 = arith.constant 0 : index
    %c0_51 = arith.constant 0 : index
    %92 = vector.load %arg11[%c0_50, %c0_51] : memref<1x32xf32, #tpu.memory_space<vmem>>, vector<1x32xf32>
    %cst_52 = arith.constant dense<0.000000e+00> : vector<8xf32>
    %93 = vector.multi_reduction <add>, %90, %cst_52 [1] : vector<8x32xf32> to vector<8xf32>
    %94 = vector.shape_cast %93 : vector<8xf32> to vector<8x1xf32>
    %cst_53 = arith.constant 3.200000e+01 : f32
    %95 = vector.broadcast %cst_53 : f32 to vector<8x1xf32>
    %96 = arith.divf %94, %95 : vector<8x1xf32>
    %97 = vector.broadcast %96 : vector<8x1xf32> to vector<8x32xf32>
    %98 = arith.subf %90, %97 : vector<8x32xf32>
    %99 = arith.mulf %98, %98 : vector<8x32xf32>
    %cst_54 = arith.constant dense<0.000000e+00> : vector<8xf32>
    %100 = vector.multi_reduction <add>, %99, %cst_54 [1] : vector<8x32xf32> to vector<8xf32>
    %101 = vector.shape_cast %100 : vector<8xf32> to vector<8x1xf32>
    %cst_55 = arith.constant 3.200000e+01 : f32
    %102 = vector.broadcast %cst_55 : f32 to vector<8x1xf32>
    %103 = arith.divf %101, %102 : vector<8x1xf32>
    %cst_56 = arith.constant 9.99999974E-6 : f32
    %104 = vector.broadcast %cst_56 : f32 to vector<8x1xf32>
    %105 = arith.addf %103, %104 : vector<8x1xf32>
    %106 = math.rsqrt %105 : vector<8x1xf32>
    %107 = vector.broadcast %106 : vector<8x1xf32> to vector<8x32xf32>
    %108 = arith.mulf %98, %107 : vector<8x32xf32>
    %109 = vector.broadcast %91 : vector<1x32xf32> to vector<8x32xf32>
    %110 = arith.mulf %108, %109 : vector<8x32xf32>
    %111 = vector.broadcast %92 : vector<1x32xf32> to vector<8x32xf32>
    %112 = arith.addf %110, %111 : vector<8x32xf32>
    %113 = arith.truncf %112 : vector<8x32xf32> to vector<8x32xbf16>
    %c0_57 = arith.constant 0 : index
    %c0_58 = arith.constant 0 : index
    %114 = vector.load %arg12[%c0_57, %c0_58] : memref<32x64xbf16, #tpu.memory_space<vmem>>, vector<32x64xbf16>
    %cst_59 = arith.constant dense<0.000000e+00> : vector<8x64xf32>
    %115 = tpu.matmul %113, %114, %cst_59 {dimension_numbers = #tpu.dot_dimension_numbers<[1], [0], [0], [1], [0, 0, 1, 1], [], []>} : vector<8x32xbf16>, vector<32x64xbf16>, vector<8x64xf32> -> vector<8x64xf32>
    %c0_60 = arith.constant 0 : index
    %c0_61 = arith.constant 0 : index
    %116 = vector.load %arg13[%c0_60, %c0_61] : memref<1x64xf32, #tpu.memory_space<vmem>>, vector<1x64xf32>
    %117 = vector.broadcast %116 : vector<1x64xf32> to vector<8x64xf32>
    %118 = arith.addf %115, %117 : vector<8x64xf32>
    %cst_62 = arith.constant 5.000000e-01 : f32
    %119 = vector.broadcast %cst_62 : f32 to vector<8x64xf32>
    %120 = arith.mulf %119, %118 : vector<8x64xf32>
    %cst_63 = arith.constant 0.707106769 : f32
    %121 = vector.broadcast %cst_63 : f32 to vector<8x64xf32>
    %122 = arith.mulf %118, %121 : vector<8x64xf32>
    %123 = math.erf %122 : vector<8x64xf32>
    %cst_64 = arith.constant 1.000000e+00 : f32
    %124 = vector.broadcast %cst_64 : f32 to vector<8x64xf32>
    %125 = arith.addf %124, %123 : vector<8x64xf32>
    %126 = arith.mulf %120, %125 : vector<8x64xf32>
    %127 = arith.truncf %126 : vector<8x64xf32> to vector<8x64xbf16>
    %c0_65 = arith.constant 0 : index
    %c0_66 = arith.constant 0 : index
    %128 = vector.load %arg14[%c0_65, %c0_66] : memref<64x32xbf16, #tpu.memory_space<vmem>>, vector<64x32xbf16>
    %cst_67 = arith.constant dense<0.000000e+00> : vector<8x32xf32>
    %129 = tpu.matmul %127, %128, %cst_67 {dimension_numbers = #tpu.dot_dimension_numbers<[1], [0], [0], [1], [0, 0, 1, 1], [], []>} : vector<8x64xbf16>, vector<64x32xbf16>, vector<8x32xf32> -> vector<8x32xf32>
    %c0_68 = arith.constant 0 : index
    %c0_69 = arith.constant 0 : index
    %130 = vector.load %arg15[%c0_68, %c0_69] : memref<1x32xf32, #tpu.memory_space<vmem>>, vector<1x32xf32>
    %131 = vector.broadcast %130 : vector<1x32xf32> to vector<8x32xf32>
    %132 = arith.addf %129, %131 : vector<8x32xf32>
    %133 = arith.addf %90, %132 : vector<8x32xf32>
    %c0_70 = arith.constant 0 : index
    %c0_71 = arith.constant 0 : index
    %c0_72 = arith.constant 0 : index
    %134 = vector.load %arg16[%c0_70, %c0_71, %c0_72] : memref<1x8x32xf32, #tpu.memory_space<vmem>>, vector<1x8x32xf32>
    %135 = vector.shape_cast %134 : vector<1x8x32xf32> to vector<8x32xf32>
    %136 = vector.shape_cast %133 : vector<8x32xf32> to vector<1x8x32xf32>
    tpu.vector_store %arg16[%c0_70, %c0_71, %c0_72], %136 {strides = array<i32>} : memref<1x8x32xf32, #tpu.memory_space<vmem>>, vector<1x8x32xf32>,
    return
  }
  func.func @transform_0(%arg0: i32, %arg1: i32) -> (i32, i32, i32) {
    %c0_i32 = arith.constant 0 : i32
    %c0_i32_0 = arith.constant 0 : i32
    %c0_i32_1 = arith.constant 0 : i32
    return %arg0, %c0_i32, %c0_i32_0 : i32, i32, i32
  }
  func.func @transform_1(%arg0: i32, %arg1: i32) -> (i32, i32) {
    %c0_i32 = arith.constant 0 : i32
    %c0_i32_0 = arith.constant 0 : i32
    %c0_i32_1 = arith.constant 0 : i32
    return %c0_i32, %c0_i32_0 : i32, i32
  }
  func.func @transform_2(%arg0: i32, %arg1: i32) -> (i32, i32) {
    %c0_i32 = arith.constant 0 : i32
    %c0_i32_0 = arith.constant 0 : i32
    %c0_i32_1 = arith.constant 0 : i32
    return %c0_i32, %c0_i32_0 : i32, i32
  }
  func.func @transform_3(%arg0: i32, %arg1: i32) -> (i32, i32) {
    %c0_i32 = arith.constant 0 : i32
    %c0_i32_0 = arith.constant 0 : i32
    %c0_i32_1 = arith.constant 0 : i32
    return %c0_i32, %c0_i32_0 : i32, i32
  }
  func.func @transform_4(%arg0: i32, %arg1: i32) -> (i32, i32) {
    %c0_i32 = arith.constant 0 : i32
    %c0_i32_0 = arith.constant 0 : i32
    %c0_i32_1 = arith.constant 0 : i32
    return %c0_i32, %c0_i32_0 : i32, i32
  }
  func.func @transform_5(%arg0: i32, %arg1: i32) -> (i32, i32) {
    %c0_i32 = arith.constant 0 : i32
    %c0_i32_0 = arith.constant 0 : i32
    %c0_i32_1 = arith.constant 0 : i32
    return %c0_i32, %c0_i32_0 : i32, i32
  }
  func.func @transform_6(%arg0: i32, %arg1: i32) -> (i32, i32) {
    %c0_i32 = arith.constant 0 : i32
    %c0_i32_0 = arith.constant 0 : i32
    %c0_i32_1 = arith.constant 0 : i32
    return %c0_i32, %c0_i32_0 : i32, i32
  }
  func.func @transform_7(%arg0: i32, %arg1: i32) -> (i32, i32) {
    %c0_i32 = arith.constant 0 : i32
    %c0_i32_0 = arith.constant 0 : i32
    %c0_i32_1 = arith.constant 0 : i32
    return %c0_i32, %c0_i32_0 : i32, i32
  }
  func.func @transform_8(%arg0: i32, %arg1: i32) -> (i32, i32) {
    %c0_i32 = arith.constant 0 : i32
    %c0_i32_0 = arith.constant 0 : i32
    %c0_i32_1 = arith.constant 0 : i32
    return %c0_i32, %c0_i32_0 : i32, i32
  }
  func.func @transform_9(%arg0: i32, %arg1: i32) -> (i32, i32) {
    %c0_i32 = arith.constant 0 : i32
    %c0_i32_0 = arith.constant 0 : i32
    %c0_i32_1 = arith.constant 0 : i32
    return %c0_i32, %c0_i32_0 : i32, i32
  }
  func.func @transform_10(%arg0: i32, %arg1: i32) -> (i32, i32) {
    %c0_i32 = arith.constant 0 : i32
    %c0_i32_0 = arith.constant 0 : i32
    %c0_i32_1 = arith.constant 0 : i32
    return %c0_i32, %c0_i32_0 : i32, i32
  }
  func.func @transform_11(%arg0: i32, %arg1: i32) -> (i32, i32) {
    %c0_i32 = arith.constant 0 : i32
    %c0_i32_0 = arith.constant 0 : i32
    %c0_i32_1 = arith.constant 0 : i32
    return %c0_i32, %c0_i32_0 : i32, i32
  }
  func.func @transform_12(%arg0: i32, %arg1: i32) -> (i32, i32) {
    %c0_i32 = arith.constant 0 : i32
    %c0_i32_0 = arith.constant 0 : i32
    %c0_i32_1 = arith.constant 0 : i32
    return %c0_i32, %c0_i32_0 : i32, i32
  }
  func.func @transform_13(%arg0: i32, %arg1: i32) -> (i32, i32) {
    %c0_i32 = arith.constant 0 : i32
    %c0_i32_0 = arith.constant 0 : i32
    %c0_i32_1 = arith.constant 0 : i32
    return %c0_i32, %c0_i32_0 : i32, i32
  }
  func.func @transform_14(%arg0: i32, %arg1: i32) -> (i32, i32, i32) {
    %c0_i32 = arith.constant 0 : i32
    %c0_i32_0 = arith.constant 0 : i32
    return %arg0, %arg1, %c0_i32 : i32, i32, i32
  }
}

</mosaic_0001>

<llo_original>
// kernel: tpu_custom_call.1
$region0: #{tpu_custom_call.1}
  #allocation0 [shape = 'u32[]', space=smem, size = 0x4, offset = 0x4, fixed_abs, tag = 'smem constant byte address 0x4 - core index']
  #allocation1 [shape = 'u32[144,128]{1,0:T(1,128)}', space=vmem, size = 0x12000, scoped, tag = 'internal scratch']
  #allocation2 [shape = 'bf16[4,8,8]{2,1,0:T(8,128)(2,1)}', space=vmem, size = 0x2000, scoped, tag = 'scratch operand']
  #allocation3 [shape = 'bf16[4,8,8]{2,1,0:T(8,128)(2,1)}', space=vmem, size = 0x2000, scoped, tag = 'scratch operand']
  #allocation4 [shape = 'bf16[4,8,8]{2,1,0:T(8,128)(2,1)}', space=vmem, size = 0x2000, scoped, tag = 'scratch operand']
  #allocation5 [shape = 'bf16[8,32]{1,0:T(8,128)(2,1)}', space=vmem, size = 0x800, scoped, tag = 'scratch operand']
  %s0 = inlined_call_operand.vmem [shape: f32[2,8,32], index: 0, kind: input, shape index: {}]
  %s1 = inlined_call_operand.vmem [shape: bf16[32,32], index: 1, kind: input, shape index: {}]
  %s2 = inlined_call_operand.vmem [shape: bf16[32,32], index: 2, kind: input, shape index: {}]
  %s3 = inlined_call_operand.hbm [shape: bf16[32,32], index: 3, kind: input, shape index: {}]
  %s4 = inlined_call_operand.hbm [shape: bf16[32,32], index: 4, kind: input, shape index: {}]
  %s5 = inlined_call_operand.vmem [shape: f32[1,32], index: 5, kind: input, shape index: {}]
  %s6 = inlined_call_operand.vmem [shape: f32[1,32], index: 6, kind: input, shape index: {}]
  %s7 = inlined_call_operand.hbm [shape: f32[1,32], index: 7, kind: input, shape index: {}]
  %s8 = inlined_call_operand.hbm [shape: f32[1,32], index: 8, kind: input, shape index: {}]
  %s9 = inlined_call_operand.hbm [shape: f32[1,32], index: 9, kind: input, shape index: {}]
  %s10 = inlined_call_operand.vmem [shape: bf16[32,64], index: 10, kind: input, shape index: {}]
  %s11 = inlined_call_operand.vmem [shape: f32[1,64], index: 11, kind: input, shape index: {}]
  %s12 = inlined_call_operand.vmem [shape: bf16[64,32], index: 12, kind: input, shape index: {}]
  %s13 = inlined_call_operand.vmem [shape: f32[1,32], index: 13, kind: input, shape index: {}]
  %s14 = inlined_call_operand.hbm [shape: f32[2,8,32], index: 14, kind: output, shape index: {}]
  %s15 = sld [smem:[#allocation0]]
  $region113: #{tpu_custom_call.1} parent=0
    _
  %s17 = ssub.s32 1, %s15
  %s18 = scalar_select 0, %s17, %s15
  $region1: #{tpu_custom_call.1} parent=0
    #allocation6 [shape = 'u8[8192]{0}', space=vmem, size = 0x2000, scoped, tag = 'input window, operand 3, single buffered']
    #allocation7 [shape = 's32[2]{0}', space=sflag, size = 0x8, scoped, tag = 'scoped memory for tpu_custom_call.1']
    #allocation8 [shape = 's32[2]{0}', space=sflag, size = 0x8, scoped, tag = 'scoped memory for tpu_custom_call.1']
    #allocation9 [shape = 'u8[8192]{0}', space=vmem, size = 0x2000, scoped, tag = 'input window, operand 4, single buffered']
    #allocation10 [shape = 's32[1]{0}', space=sflag, size = 0x4, scoped, tag = 'scoped memory for tpu_custom_call.1']
    #allocation11 [shape = 'u8[512]{0}', space=vmem, size = 0x400, scoped, tag = 'input window, operand 7, single buffered']
    #allocation12 [shape = 'u8[512]{0}', space=vmem, size = 0x400, scoped, tag = 'input window, operand 8, single buffered']
    #allocation13 [shape = 's32[1]{0}', space=sflag, size = 0x4, scoped, tag = 'scoped memory for tpu_custom_call.1']
    #allocation14 [shape = 'u8[512]{0}', space=vmem, size = 0x400, scoped, tag = 'input window, operand 9, single buffered']
    #allocation15 [shape = 'u8[8192]{0}', space=vmem, size = 0x2000, scoped, tag = 'output window, operand 0']
    %19 = vsyncpa [#allocation7], 0
    %20 = vsyncpa [#allocation10], 0
    %21 = vsyncpa [#allocation13], 0
    %22 = vsyncpa [#allocation8], 0
    %s23 = scalar_lea.sflag [#allocation8], 1
    %24 = vsyncpa %s23, 0
    loop: start=0, step=1, limit=4
    $region2: #{tpu_custom_call.1} parent=1 // loop_pre_header
      _
    $region3: #{tpu_custom_call.1} parent=1 // loop_header
      %s26 = sphi 0, %s30
      %p27 = scmp.ge.s32.totalorder %s26, 4
      %s33 = sphi 0, %s45
      %s34 = sphi 0, %s41
      %s35 = sphi 0, %s33
      %s36 = sphi 0, %s34
      %s37 = sphi 0, %s35
      %s38 = sphi 0, %s36
      %s48 = sphi 0, %s50
      %s51 = sphi 0, %s48
      %s52 = sphi 0, %s51
      %s68 = sphi 0, %s52
      %s72 = sphi 0, %s72
      %s74 = sphi 0, %s72
      %s75 = sphi 0, %s74
      %s89 = sphi 0, %s75
      %s93 = sphi 0, %s93
      %s95 = sphi 0, %s93
      %s96 = sphi 0, %s95
      %s110 = sphi 0, %s96
      %s114 = sphi 0, %s114
      %s116 = sphi 0, %s114
      %s117 = sphi 0, %s116
      %s131 = sphi 0, %s117
      %s135 = sphi 0, %s135
      %s137 = sphi 0, %s135
      %s138 = sphi 0, %s137
      %s152 = sphi 0, %s138
      %s156 = sphi 0, %s156
      %s158 = sphi 0, %s156
      %s159 = sphi 0, %s158
      %s173 = sphi 0, %s159
      %s177 = sphi 0, %s177
      %s179 = sphi 0, %s177
      %s180 = sphi 0, %s179
      %s194 = sphi 0, %s180
      %s198 = sphi 0, %s198
      %s200 = sphi 0, %s198
      %s201 = sphi 0, %s200
      %s215 = sphi 0, %s201
      %s219 = sphi 0, %s219
      %s221 = sphi 0, %s219
      %s222 = sphi 0, %s221
      %s236 = sphi 0, %s222
      %s240 = sphi 0, %s240
      %s242 = sphi 0, %s240
      %s243 = sphi 0, %s242
      %s257 = sphi 0, %s243
      %s261 = sphi 0, %s261
      %s263 = sphi 0, %s261
      %s264 = sphi 0, %s263
      %s278 = sphi 0, %s264
      %s282 = sphi 0, %s282
      %s284 = sphi 0, %s282
      %s285 = sphi 0, %s284
      %s299 = sphi 0, %s285
      %s303 = sphi 0, %s303
      %s305 = sphi 0, %s303
      %s306 = sphi 0, %s305
      %s320 = sphi 0, %s306
      %s324 = sphi 0, %s324
      %s326 = sphi 0, %s324
      %s327 = sphi 0, %s326
      %s341 = sphi 0, %s327
      %s349 = sphi 0, %s351
      %s352 = sphi 0, %s349
      %s353 = sphi 0, %s352
      %s369 = sphi 0, %s353
    $region4: #{tpu_custom_call.1} parent=1 // loop_header_branch
      %29 = sbr.rel (%p27) target = $region8
    $region5: #{tpu_custom_call.1} parent=1 // loop_body
      %s31 = ssub.s32 %s26, 1
      %s32 = ssub.s32 %s26, 2
      %s39 = sadd.s32 1, %s34
      %p40 = scmp.ge.s32.totalorder %s39, 1
      %s41 = scalar_select %p40, 0, %s39
      %s42 = sadd.s32 1, %s33
      %s43 = scalar_select %p40, %s42, %s33
      %p44 = scmp.ge.s32.totalorder %s43, 2
      %s45 = scalar_select %p44, 0, %s43
      %s46 = ssub.s32 %s33, %s45
      %p47 = scmp.eq.s32.totalorder %s46, 0
      %s49 = sadd.s32 %s48, 1
      %s50 = scalar_select %p47, %s48, %s49
      %p53 = pneg %p47
      %p54 = scmp.eq.s32.totalorder %s26, 1
      %p55 = por %p53, %p54
      %p56 = scmp.ne.s32.totalorder %s48, %s51
      %p57 = scmp.eq.s32.totalorder %s26, 0
      %p58 = por %p56, %p57
      %p59 = scmp.ne.s32.totalorder %s48, %s51
      %p60 = scmp.eq.s32.totalorder %s31, 1
      %p61 = por %p59, %p60
      %p62 = scmp.ne.s32.totalorder %s51, %s52
      %p63 = scmp.eq.s32.totalorder %s31, 0
      %p64 = por %p62, %p63
      %p65 = scmp.ne.s32.totalorder %s51, %s52
      %p66 = scmp.eq.s32.totalorder %s32, 1
      %p67 = por %p65, %p66
      %p69 = scmp.ne.s32.totalorder %s52, %s68
      %p70 = scmp.eq.s32.totalorder %s32, 0
      %p71 = por %p69, %p70
      %s73 = sadd.s32 %s72, 1
      %p76 = scmp.eq.s32.totalorder %s26, 1
      %p77 = scmp.ne.s32.totalorder %s72, %s74
      %p78 = scmp.eq.s32.totalorder %s26, 0
      %p79 = por %p77, %p78
      %p80 = scmp.ne.s32.totalorder %s72, %s74
      %p81 = scmp.eq.s32.totalorder %s31, 1
      %p82 = por %p80, %p81
      %p83 = scmp.ne.s32.totalorder %s74, %s75
      %p84 = scmp.eq.s32.totalorder %s31, 0
      %p85 = por %p83, %p84
      %p86 = scmp.ne.s32.totalorder %s74, %s75
      %p87 = scmp.eq.s32.totalorder %s32, 1
      %p88 = por %p86, %p87
      %p90 = scmp.ne.s32.totalorder %s75, %s89
      %p91 = scmp.eq.s32.totalorder %s32, 0
      %p92 = por %p90, %p91
      %s94 = sadd.s32 %s93, 1
      %p97 = scmp.eq.s32.totalorder %s26, 1
      %p98 = scmp.ne.s32.totalorder %s93, %s95
      %p99 = scmp.eq.s32.totalorder %s26, 0
      %p100 = por %p98, %p99
      %p101 = scmp.ne.s32.totalorder %s93, %s95
      %p102 = scmp.eq.s32.totalorder %s31, 1
      %p103 = por %p101, %p102
      %p104 = scmp.ne.s32.totalorder %s95, %s96
      %p105 = scmp.eq.s32.totalorder %s31, 0
      %p106 = por %p104, %p105
      %p107 = scmp.ne.s32.totalorder %s95, %s96
      %p108 = scmp.eq.s32.totalorder %s32, 1
      %p109 = por %p107, %p108
      %p111 = scmp.ne.s32.totalorder %s96, %s110
      %p112 = scmp.eq.s32.totalorder %s32, 0
      %p113 = por %p111, %p112
      %s115 = sadd.s32 %s114, 1
      %p118 = scmp.eq.s32.totalorder %s26, 1
      %p119 = scmp.ne.s32.totalorder %s114, %s116
      %p120 = scmp.eq.s32.totalorder %s26, 0
      %p121 = por %p119, %p120
      %p122 = scmp.ne.s32.totalorder %s114, %s116
      %p123 = scmp.eq.s32.totalorder %s31, 1
      %p124 = por %p122, %p123
      %p125 = scmp.ne.s32.totalorder %s116, %s117
      %p126 = scmp.eq.s32.totalorder %s31, 0
      %p127 = por %p125, %p126
      %p128 = scmp.ne.s32.totalorder %s116, %s117
      %p129 = scmp.eq.s32.totalorder %s32, 1
      %p130 = por %p128, %p129
      %p132 = scmp.ne.s32.totalorder %s117, %s131
      %p133 = scmp.eq.s32.totalorder %s32, 0
      %p134 = por %p132, %p133
      %s136 = sadd.s32 %s135, 1
      %p139 = scmp.eq.s32.totalorder %s26, 1
      %p140 = scmp.ne.s32.totalorder %s135, %s137
      %p141 = scmp.eq.s32.totalorder %s26, 0
      %p142 = por %p140, %p141
      %p143 = scmp.ne.s32.totalorder %s135, %s137
      %p144 = scmp.eq.s32.totalorder %s31, 1
      %p145 = por %p143, %p144
      %p146 = scmp.ne.s32.totalorder %s137, %s138
      %p147 = scmp.eq.s32.totalorder %s31, 0
      %p148 = por %p146, %p147
      %p149 = scmp.ne.s32.totalorder %s137, %s138
      %p150 = scmp.eq.s32.totalorder %s32, 1
      %p151 = por %p149, %p150
      %p153 = scmp.ne.s32.totalorder %s138, %s152
      %p154 = scmp.eq.s32.totalorder %s32, 0
      %p155 = por %p153, %p154
      %s157 = sadd.s32 %s156, 1
      %p160 = scmp.eq.s32.totalorder %s26, 1
      %p161 = scmp.ne.s32.totalorder %s156, %s158
      %p162 = scmp.eq.s32.totalorder %s26, 0
      %p163 = por %p161, %p162
      %p164 = scmp.ne.s32.totalorder %s156, %s158
      %p165 = scmp.eq.s32.totalorder %s31, 1
      %p166 = por %p164, %p165
      %p167 = scmp.ne.s32.totalorder %s158, %s159
      %p168 = scmp.eq.s32.totalorder %s31, 0
      %p169 = por %p167, %p168
      %p170 = scmp.ne.s32.totalorder %s158, %s159
      %p171 = scmp.eq.s32.totalorder %s32, 1
      %p172 = por %p170, %p171
      %p174 = scmp.ne.s32.totalorder %s159, %s173
      %p175 = scmp.eq.s32.totalorder %s32, 0
      %p176 = por %p174, %p175
      %s178 = sadd.s32 %s177, 1
      %p181 = scmp.eq.s32.totalorder %s26, 1
      %p182 = scmp.ne.s32.totalorder %s177, %s179
      %p183 = scmp.eq.s32.totalorder %s26, 0
      %p184 = por %p182, %p183
      %p185 = scmp.ne.s32.totalorder %s177, %s179
      %p186 = scmp.eq.s32.totalorder %s31, 1
      %p187 = por %p185, %p186
      %p188 = scmp.ne.s32.totalorder %s179, %s180
      %p189 = scmp.eq.s32.totalorder %s31, 0
      %p190 = por %p188, %p189
      %p191 = scmp.ne.s32.totalorder %s179, %s180
      %p192 = scmp.eq.s32.totalorder %s32, 1
      %p193 = por %p191, %p192
      %p195 = scmp.ne.s32.totalorder %s180, %s194
      %p196 = scmp.eq.s32.totalorder %s32, 0
      %p197 = por %p195, %p196
      %s199 = sadd.s32 %s198, 1
      %p202 = scmp.eq.s32.totalorder %s26, 1
      %p203 = scmp.ne.s32.totalorder %s198, %s200
      %p204 = scmp.eq.s32.totalorder %s26, 0
      %p205 = por %p203, %p204
      %p206 = scmp.ne.s32.totalorder %s198, %s200
      %p207 = scmp.eq.s32.totalorder %s31, 1
      %p208 = por %p206, %p207
      %p209 = scmp.ne.s32.totalorder %s200, %s201
      %p210 = scmp.eq.s32.totalorder %s31, 0
      %p211 = por %p209, %p210
      %p212 = scmp.ne.s32.totalorder %s200, %s201
      %p213 = scmp.eq.s32.totalorder %s32, 1
      %p214 = por %p212, %p213
      %p216 = scmp.ne.s32.totalorder %s201, %s215
      %p217 = scmp.eq.s32.totalorder %s32, 0
      %p218 = por %p216, %p217
      %s220 = sadd.s32 %s219, 1
      %p223 = scmp.eq.s32.totalorder %s26, 1
      %p224 = scmp.ne.s32.totalorder %s219, %s221
      %p225 = scmp.eq.s32.totalorder %s26, 0
      %p226 = por %p224, %p225
      %p227 = scmp.ne.s32.totalorder %s219, %s221
      %p228 = scmp.eq.s32.totalorder %s31, 1
      %p229 = por %p227, %p228
      %p230 = scmp.ne.s32.totalorder %s221, %s222
      %p231 = scmp.eq.s32.totalorder %s31, 0
      %p232 = por %p230, %p231
      %p233 = scmp.ne.s32.totalorder %s221, %s222
      %p234 = scmp.eq.s32.totalorder %s32, 1
      %p235 = por %p233, %p234
      %p237 = scmp.ne.s32.totalorder %s222, %s236
      %p238 = scmp.eq.s32.totalorder %s32, 0
      %p239 = por %p237, %p238
      %s241 = sadd.s32 %s240, 1
      %p244 = scmp.eq.s32.totalorder %s26, 1
      %p245 = scmp.ne.s32.totalorder %s240, %s242
      %p246 = scmp.eq.s32.totalorder %s26, 0
      %p247 = por %p245, %p246
      %p248 = scmp.ne.s32.totalorder %s240, %s242
      %p249 = scmp.eq.s32.totalorder %s31, 1
      %p250 = por %p248, %p249
      %p251 = scmp.ne.s32.totalorder %s242, %s243
      %p252 = scmp.eq.s32.totalorder %s31, 0
      %p253 = por %p251, %p252
      %p254 = scmp.ne.s32.totalorder %s242, %s243
      %p255 = scmp.eq.s32.totalorder %s32, 1
      %p256 = por %p254, %p255
      %p258 = scmp.ne.s32.totalorder %s243, %s257
      %p259 = scmp.eq.s32.totalorder %s32, 0
      %p260 = por %p258, %p259
      %s262 = sadd.s32 %s261, 1
      %p265 = scmp.eq.s32.totalorder %s26, 1
      %p266 = scmp.ne.s32.totalorder %s261, %s263
      %p267 = scmp.eq.s32.totalorder %s26, 0
      %p268 = por %p266, %p267
      %p269 = scmp.ne.s32.totalorder %s261, %s263
      %p270 = scmp.eq.s32.totalorder %s31, 1
      %p271 = por %p269, %p270
      %p272 = scmp.ne.s32.totalorder %s263, %s264
      %p273 = scmp.eq.s32.totalorder %s31, 0
      %p274 = por %p272, %p273
      %p275 = scmp.ne.s32.totalorder %s263, %s264
      %p276 = scmp.eq.s32.totalorder %s32, 1
      %p277 = por %p275, %p276
      %p279 = scmp.ne.s32.totalorder %s264, %s278
      %p280 = scmp.eq.s32.totalorder %s32, 0
      %p281 = por %p279, %p280
      %s283 = sadd.s32 %s282, 1
      %p286 = scmp.eq.s32.totalorder %s26, 1
      %p287 = scmp.ne.s32.totalorder %s282, %s284
      %p288 = scmp.eq.s32.totalorder %s26, 0
      %p289 = por %p287, %p288
      %p290 = scmp.ne.s32.totalorder %s282, %s284
      %p291 = scmp.eq.s32.totalorder %s31, 1
      %p292 = por %p290, %p291
      %p293 = scmp.ne.s32.totalorder %s284, %s285
      %p294 = scmp.eq.s32.totalorder %s31, 0
      %p295 = por %p293, %p294
      %p296 = scmp.ne.s32.totalorder %s284, %s285
      %p297 = scmp.eq.s32.totalorder %s32, 1
      %p298 = por %p296, %p297
      %p300 = scmp.ne.s32.totalorder %s285, %s299
      %p301 = scmp.eq.s32.totalorder %s32, 0
      %p302 = por %p300, %p301
      %s304 = sadd.s32 %s303, 1
      %p307 = scmp.eq.s32.totalorder %s26, 1
      %p308 = scmp.ne.s32.totalorder %s303, %s305
      %p309 = scmp.eq.s32.totalorder %s26, 0
      %p310 = por %p308, %p309
      %p311 = scmp.ne.s32.totalorder %s303, %s305
      %p312 = scmp.eq.s32.totalorder %s31, 1
      %p313 = por %p311, %p312
      %p314 = scmp.ne.s32.totalorder %s305, %s306
      %p315 = scmp.eq.s32.totalorder %s31, 0
      %p316 = por %p314, %p315
      %p317 = scmp.ne.s32.totalorder %s305, %s306
      %p318 = scmp.eq.s32.totalorder %s32, 1
      %p319 = por %p317, %p318
      %p321 = scmp.ne.s32.totalorder %s306, %s320
      %p322 = scmp.eq.s32.totalorder %s32, 0
      %p323 = por %p321, %p322
      %s325 = sadd.s32 %s324, 1
      %p328 = scmp.eq.s32.totalorder %s26, 1
      %p329 = scmp.ne.s32.totalorder %s324, %s326
      %p330 = scmp.eq.s32.totalorder %s26, 0
      %p331 = por %p329, %p330
      %p332 = scmp.ne.s32.totalorder %s324, %s326
      %p333 = scmp.eq.s32.totalorder %s31, 1
      %p334 = por %p332, %p333
      %p335 = scmp.ne.s32.totalorder %s326, %s327
      %p336 = scmp.eq.s32.totalorder %s31, 0
      %p337 = por %p335, %p336
      %p338 = scmp.ne.s32.totalorder %s326, %s327
      %p339 = scmp.eq.s32.totalorder %s32, 1
      %p340 = por %p338, %p339
      %p342 = scmp.ne.s32.totalorder %s327, %s341
      %p343 = scmp.eq.s32.totalorder %s32, 0
      %p344 = por %p342, %p343
      %s345 = ssub.s32 %s33, %s45
      %s346 = ssub.s32 %s34, %s41
      %s347 = sor.u32 %s345, %s346
      %p348 = scmp.eq.s32.totalorder %s347, 0
      %s350 = sadd.s32 %s349, 1
      %s351 = scalar_select %p348, %s349, %s350
      %p354 = pneg %p348
      %p355 = scmp.eq.s32.totalorder %s26, 1
      %p356 = por %p354, %p355
      %p357 = scmp.ne.s32.totalorder %s349, %s352
      %p358 = scmp.eq.s32.totalorder %s26, 0
      %p359 = por %p357, %p358
      %p360 = scmp.ne.s32.totalorder %s349, %s352
      %p361 = scmp.eq.s32.totalorder %s31, 1
      %p362 = por %p360, %p361
      %p363 = scmp.ne.s32.totalorder %s352, %s353
      %p364 = scmp.eq.s32.totalorder %s31, 0
      %p365 = por %p363, %p364
      %p366 = scmp.ne.s32.totalorder %s352, %s353
      %p367 = scmp.eq.s32.totalorder %s32, 1
      %p368 = por %p366, %p367
      %p370 = scmp.ne.s32.totalorder %s353, %s369
      %p371 = scmp.eq.s32.totalorder %s32, 0
      %p372 = por %p370, %p371
      %p373 = scmp.le.s32.totalorder 1, %s26
      %p374 = scmp.lt.s32.totalorder %s26, 3
      %p375 = pnand %p373, %p374
      %p376 = pneg %p375
      // Predicated region
      $region9: #{tpu_custom_call.1} parent=5 // pred_check
        _
      $region10: #{tpu_custom_call.1} parent=5 // pred_check_branch
        %378 = sbr.rel (%p375) target = $region12
      $region11: #{tpu_custom_call.1} parent=5 // pred_region
        %s379 = ssub.s32 %s26, 1
        // Predicated region
        $region13: #{tpu_custom_call.1} parent=11 // pred_check
          %p380 = pneg %p85
        $region14: #{tpu_custom_call.1} parent=11 // pred_check_branch
          %382 = sbr.rel (%p380) target = $region16
        $region15: #{tpu_custom_call.1} parent=11 // pred_region
          _
        $region16: #{tpu_custom_call.1} parent=11 // pred_fallthru
          _
        // Predicated region
        $region17: #{tpu_custom_call.1} parent=11 // pred_check
          %p383 = pneg %p106
        $region18: #{tpu_custom_call.1} parent=11 // pred_check_branch
          %385 = sbr.rel (%p383) target = $region20
        $region19: #{tpu_custom_call.1} parent=11 // pred_region
          _
        $region20: #{tpu_custom_call.1} parent=11 // pred_fallthru
          _
        // Predicated region
        $region21: #{tpu_custom_call.1} parent=11 // pred_check
          %p386 = pneg %p127
        $region22: #{tpu_custom_call.1} parent=11 // pred_check_branch
          %388 = sbr.rel (%p386) target = $region24
        $region23: #{tpu_custom_call.1} parent=11 // pred_region
          %s390 = ssub.s32 256, 256
          %391 = vsyncadd [#allocation7], %s390
          %s392 = sshll.u32 [#allocation6], 4
          %s393 = int_to_ptr.vmem [resolvable:$true] %s392
          %398 = dma.hbm_to_vmem [thread:$0]  %s3, 256, %s393, [#allocation7], 64, 64, 4
        $region24: #{tpu_custom_call.1} parent=11 // pred_fallthru
          _
        // Predicated region
        $region25: #{tpu_custom_call.1} parent=11 // pred_check
          %p399 = pneg %p148
        $region26: #{tpu_custom_call.1} parent=11 // pred_check_branch
          %401 = sbr.rel (%p399) target = $region28
        $region27: #{tpu_custom_call.1} parent=11 // pred_region
          %s403 = ssub.s32 256, 256
          %404 = vsyncadd [#allocation10], %s403
          %s405 = sshll.u32 [#allocation9], 4
          %s406 = int_to_ptr.vmem [resolvable:$true] %s405
          %411 = dma.hbm_to_vmem [thread:$0]  %s4, 256, %s406, [#allocation10], 64, 64, 4
        $region28: #{tpu_custom_call.1} parent=11 // pred_fallthru
          _
        // Predicated region
        $region29: #{tpu_custom_call.1} parent=11 // pred_check
          %p412 = pneg %p169
        $region30: #{tpu_custom_call.1} parent=11 // pred_check_branch
          %414 = sbr.rel (%p412) target = $region32
        $region31: #{tpu_custom_call.1} parent=11 // pred_region
          _
        $region32: #{tpu_custom_call.1} parent=11 // pred_fallthru
          _
        // Predicated region
        $region33: #{tpu_custom_call.1} parent=11 // pred_check
          %p415 = pneg %p190
        $region34: #{tpu_custom_call.1} parent=11 // pred_check_branch
          %417 = sbr.rel (%p415) target = $region36
        $region35: #{tpu_custom_call.1} parent=11 // pred_region
          _
        $region36: #{tpu_custom_call.1} parent=11 // pred_fallthru
          _
        // Predicated region
        $region37: #{tpu_custom_call.1} parent=11 // pred_check
          %p418 = pneg %p211
        $region38: #{tpu_custom_call.1} parent=11 // pred_check_branch
          %420 = sbr.rel (%p418) target = $region40
        $region39: #{tpu_custom_call.1} parent=11 // pred_region
          %s422 = ssub.s32 16, 16
          %423 = vsyncadd [#allocation10], %s422
          %s425 = sshll.u32 [#allocation11], 4
          %s426 = int_to_ptr.vmem [resolvable:$true] %s425
          %428 = dma.hbm_to_vmem [thread:$0]  %s7, 16, %s426, [#allocation10]
        $region40: #{tpu_custom_call.1} parent=11 // pred_fallthru
          _
        // Predicated region
        $region41: #{tpu_custom_call.1} parent=11 // pred_check
          %p429 = pneg %p232
        $region42: #{tpu_custom_call.1} parent=11 // pred_check_branch
          %431 = sbr.rel (%p429) target = $region44
        $region43: #{tpu_custom_call.1} parent=11 // pred_region
          %s433 = ssub.s32 16, 16
          %434 = vsyncadd [#allocation13], %s433
          %s436 = sshll.u32 [#allocation12], 4
          %s437 = int_to_ptr.vmem [resolvable:$true] %s436
          %439 = dma.hbm_to_vmem [thread:$0]  %s8, 16, %s437, [#allocation13]
        $region44: #{tpu_custom_call.1} parent=11 // pred_fallthru
          _
        // Predicated region
        $region45: #{tpu_custom_call.1} parent=11 // pred_check
          %p440 = pneg %p253
        $region46: #{tpu_custom_call.1} parent=11 // pred_check_branch
          %442 = sbr.rel (%p440) target = $region48
        $region47: #{tpu_custom_call.1} parent=11 // pred_region
          %s444 = ssub.s32 16, 16
          %445 = vsyncadd [#allocation13], %s444
          %s447 = sshll.u32 [#allocation14], 4
          %s448 = int_to_ptr.vmem [resolvable:$true] %s447
          %450 = dma.hbm_to_vmem [thread:$0]  %s9, 16, %s448, [#allocation13]
        $region48: #{tpu_custom_call.1} parent=11 // pred_fallthru
          _
        // Predicated region
        $region49: #{tpu_custom_call.1} parent=11 // pred_check
          %p451 = pneg %p274
        $region50: #{tpu_custom_call.1} parent=11 // pred_check_branch
          %453 = sbr.rel (%p451) target = $region52
        $region51: #{tpu_custom_call.1} parent=11 // pred_region
          _
        $region52: #{tpu_custom_call.1} parent=11 // pred_fallthru
          _
        // Predicated region
        $region53: #{tpu_custom_call.1} parent=11 // pred_check
          %p454 = pneg %p295
        $region54: #{tpu_custom_call.1} parent=11 // pred_check_branch
          %456 = sbr.rel (%p454) target = $region56
        $region55: #{tpu_custom_call.1} parent=11 // pred_region
          _
        $region56: #{tpu_custom_call.1} parent=11 // pred_fallthru
          _
        // Predicated region
        $region57: #{tpu_custom_call.1} parent=11 // pred_check
          %p457 = pneg %p316
        $region58: #{tpu_custom_call.1} parent=11 // pred_check_branch
          %459 = sbr.rel (%p457) target = $region60
        $region59: #{tpu_custom_call.1} parent=11 // pred_region
          _
        $region60: #{tpu_custom_call.1} parent=11 // pred_fallthru
          _
        // Predicated region
        $region61: #{tpu_custom_call.1} parent=11 // pred_check
          %p460 = pneg %p337
        $region62: #{tpu_custom_call.1} parent=11 // pred_check_branch
          %462 = sbr.rel (%p460) target = $region64
        $region63: #{tpu_custom_call.1} parent=11 // pred_region
          _
        $region64: #{tpu_custom_call.1} parent=11 // pred_fallthru
          _
      $region12: #{tpu_custom_call.1} parent=5 // pred_fallthru
        _
      %p463 = scmp.lt.s32.totalorder %s26, 2
      // Predicated region
      $region65: #{tpu_custom_call.1} parent=5 // pred_check
        %p464 = pneg %p463
      $region66: #{tpu_custom_call.1} parent=5 // pred_check_branch
        %466 = sbr.rel (%p464) target = $region68
      $region67: #{tpu_custom_call.1} parent=5 // pred_region
        // Predicated region
        $region69: #{tpu_custom_call.1} parent=67 // pred_check
          %p467 = pneg %p58
        $region70: #{tpu_custom_call.1} parent=67 // pred_check_branch
          %469 = sbr.rel (%p467) target = $region72
        $region71: #{tpu_custom_call.1} parent=67 // pred_region
          %p470 = scmp.lt.s32.totalorder %s33, 1
          %s471 = scalar_select %p470, %s33, 1
          %s472 = smul.addr %s471, 8
          %s473 = scalar_lea.vmem %s0, %s472
        $region72: #{tpu_custom_call.1} parent=67 // pred_fallthru
          _
      $region68: #{tpu_custom_call.1} parent=5 // pred_fallthru
        _
      %p474 = scmp.le.s32.totalorder 1, %s26
      %p475 = scmp.lt.s32.totalorder %s26, 3
      %p476 = pnand %p474, %p475
      %p477 = pneg %p476
      // Predicated region
      $region73: #{tpu_custom_call.1} parent=5 // pred_check
        _
      $region74: #{tpu_custom_call.1} parent=5 // pred_check_branch
        %479 = sbr.rel (%p476) target = $region76
      $region75: #{tpu_custom_call.1} parent=5 // pred_region
        %s480 = ssub.s32 %s26, 1
        // Predicated region
        $region77: #{tpu_custom_call.1} parent=75 // pred_check
          %p481 = pneg %p127
        $region78: #{tpu_custom_call.1} parent=75 // pred_check_branch
          %483 = sbr.rel (%p481) target = $region80
        $region79: #{tpu_custom_call.1} parent=75 // pred_region
          %484 = dma.done [#allocation7], 256
        $region80: #{tpu_custom_call.1} parent=75 // pred_fallthru
          _
        // Predicated region
        $region81: #{tpu_custom_call.1} parent=75 // pred_check
          %p485 = pneg %p148
        $region82: #{tpu_custom_call.1} parent=75 // pred_check_branch
          %487 = sbr.rel (%p485) target = $region84
        $region83: #{tpu_custom_call.1} parent=75 // pred_region
          %488 = dma.done [#allocation10], 256
        $region84: #{tpu_custom_call.1} parent=75 // pred_fallthru
          _
        // Predicated region
        $region85: #{tpu_custom_call.1} parent=75 // pred_check
          %p489 = pneg %p211
        $region86: #{tpu_custom_call.1} parent=75 // pred_check_branch
          %491 = sbr.rel (%p489) target = $region88
        $region87: #{tpu_custom_call.1} parent=75 // pred_region
          %492 = dma.done [#allocation10], 16
        $region88: #{tpu_custom_call.1} parent=75 // pred_fallthru
          _
        // Predicated region
        $region89: #{tpu_custom_call.1} parent=75 // pred_check
          %p493 = pneg %p232
        $region90: #{tpu_custom_call.1} parent=75 // pred_check_branch
          %495 = sbr.rel (%p493) target = $region92
        $region91: #{tpu_custom_call.1} parent=75 // pred_region
          %496 = dma.done [#allocation13], 16
        $region92: #{tpu_custom_call.1} parent=75 // pred_fallthru
          _
        // Predicated region
        $region93: #{tpu_custom_call.1} parent=75 // pred_check
          %p497 = pneg %p253
        $region94: #{tpu_custom_call.1} parent=75 // pred_check_branch
          %499 = sbr.rel (%p497) target = $region96
        $region95: #{tpu_custom_call.1} parent=75 // pred_region
          %500 = dma.done [#allocation13], 16
        $region96: #{tpu_custom_call.1} parent=75 // pred_fallthru
          _
        %p501 = scmp.lt.s32.totalorder %s35, 1
        %s502 = scalar_select %p501, %s35, 1
        %s503 = smul.addr %s502, 8
        %s504 = scalar_lea.vmem %s0, %s503
        %p505 = pneg %p64
        %p506 = pneg %p61
        %p507 = pneg %p85
        %p508 = pneg %p82
        %p509 = pneg %p106
        %p510 = pneg %p103
        %p511 = pneg %p127
        %p512 = pneg %p124
        %p513 = pneg %p148
        %p514 = pneg %p145
        %p515 = pneg %p169
        %p516 = pneg %p166
        %p517 = pneg %p190
        %p518 = pneg %p187
        %p519 = pneg %p211
        %p520 = pneg %p208
        %p521 = pneg %p232
        %p522 = pneg %p229
        %p523 = pneg %p253
        %p524 = pneg %p250
        %p525 = pneg %p274
        %p526 = pneg %p271
        %p527 = pneg %p295
        %p528 = pneg %p292
        %p529 = pneg %p316
        %p530 = pneg %p313
        %p531 = pneg %p337
        %p532 = pneg %p334
        %p533 = pneg %p365
        %p534 = pneg %p362
        %s535 = sand.u32 %s352, 1
        %s536 = scalar_lea.sflag [#allocation8], %s535
        %s537 = sand.u32 %s352, 1
        %s538 = smul.addr %s537, 8
        %s539 = scalar_lea.vmem [#allocation15], %s538
        %p540 = scmp.lt.s32.totalorder %s35, 1
        %s541 = scalar_select %p540, %s35, 1
        %s542 = smul.addr %s541, 8
        %s543 = scalar_lea.vmem %s0, %s542
        %p545 = scmp.eq.s32.totalorder %s36, 0
        // Predicated region
        $region97: #{tpu_custom_call.1} parent=75 // pred_check
          %p546 = pneg %p545
        $region98: #{tpu_custom_call.1} parent=75 // pred_check_branch
          %548 = sbr.rel (%p546) target = $region100
        $region99: #{tpu_custom_call.1} parent=75 // pred_region
          %v549 = vld [vmem:[%s543] sm:$0xff]
          %v550 = vld [vmem:[%s6] sm:$0x1]
          %v551 = vld [vmem:[#allocation11] sm:$0x1]
          %vm552 = vcmask 261120
          %v553 = vsel %vm552, %v549, 0.0
          %554 = vadd.xlane.f32.xlu0 %v553
          %v555 = vpop.xlane.xlu0 %554
          %v556 = vrcp.pop 32.0
          %v557 = vmul.f32 %v555, %v556
          %v558 = vsub.f32 %v549, %v557
          %v559 = vmul.f32 %v558, %v558
          %v560 = vsel %vm552, %v559, 0.0
          %561 = vadd.xlane.f32.xlu0 %v560
          %v562 = vpop.xlane.xlu0 %561
          %v563 = vmul.f32 %v562, %v556
          %v564 = vadd.f32 %v563, 1e-05
          %v565 = vrsqrt.pop %v564
          %v566 = vmul.f32 %v558, %v565
          %v568 = vlaneseq
          %v569 = vshrl.u32 %v568, 7
          %v570 = vsub.s32 0, %v569
          %v571 = vrot.slane %v550, %v570
          %v573 = vmul.f32 %v566, %v571
          %v575 = vlaneseq
          %v576 = vshrl.u32 %v575, 7
          %v577 = vsub.s32 0, %v576
          %v578 = vrot.slane %v551, %v577
          %v580 = vadd.f32 %v573, %v578
          %v581 = vpack.c.bf16 %v580, %v580
          %v582 = vld [vmem:[%s2] sm:$0xf]
          %v583 = vld [vmem:[%s2 + $0x4] sm:$0xf]
          %v584 = vld [vmem:[%s2 + $0x8] sm:$0xf]
          %v585 = vld [vmem:[%s2 + $0xc] sm:$0xf]
          %v590 = vunpack.c.l.b16 %v582
          %v591 = vunpack.c.l.b16 %v583
          %v592 = vunpack.c.l.b16 %v584
          %v593 = vunpack.c.l.b16 %v585
          %v594 = vpack.c.b16 %v591, %v590
          %v595 = vpack.c.b16 %v593, %v592
          %v599 = vsel %vm552, %v581, 0
          %601 = vmatprep.subr.bf16.mxu0 0
          %602 = vmatpush1.bf16.msra.mxu0 %v594
          %603 = vmatprep.subr.bf16.mxu0 0
          %604 = vmatpush1.bf16.msra.mxu0 %v595
          %605 = vmatprep.subr.bf16.mxu0 0
          %606 = vmatpush1.bf16.msra.mxu0 0
          %607 = vmatprep.subr.bf16.mxu0 0
          %608 = vmatpush1.bf16.msra.mxu0 0
          %609 = vmatprep.subr.bf16.mxu0 0
          %610 = vmatpush1.bf16.msra.mxu0 0
          %611 = vmatprep.subr.bf16.mxu0 0
          %612 = vmatpush1.bf16.msra.mxu0 0
          %613 = vmatprep.subr.bf16.mxu0 0
          %614 = vmatpush1.bf16.msra.mxu0 0
          %615 = vmatprep.subr.bf16.mxu0 0
          %616 = vmatpush1.bf16.msra.mxu0 0
          %617 = vmatprep.subr.bf16.mxu0 0
          %618 = vmatpush1.bf16.msra.mxu0 0
          %619 = vmatprep.subr.bf16.mxu0 0
          %620 = vmatpush1.bf16.msra.mxu0 0
          %621 = vmatprep.subr.bf16.mxu0 0
          %622 = vmatpush1.bf16.msra.mxu0 0
          %623 = vmatprep.subr.bf16.mxu0 0
          %624 = vmatpush1.bf16.msra.mxu0 0
          %625 = vmatprep.subr.bf16.mxu0 0
          %626 = vmatpush1.bf16.msra.mxu0 0
          %627 = vmatprep.subr.bf16.mxu0 0
          %628 = vmatpush1.bf16.msra.mxu0 0
          %629 = vmatprep.subr.bf16.mxu0 0
          %630 = vmatpush1.bf16.msra.mxu0 0
          %631 = vmatprep.subr.bf16.mxu0 0
          %632 = vmatpush1.bf16.msra.mxu0 0
          %633 = vmatprep.mubr.bf16.mxu0 0
          %634 = vmatmul.mubr.bf16.gmra.mrb[0].mxu0 %v599
          %v635 = vpop.f32.mrb[0].mxu0
          %v636 = vadd.f32 0.0, %v635
          %v637 = vpop.f32.mrb[0].mxu0
          %v638 = vpop.f32.mrb[0].mxu0
          %v639 = vpop.f32.mrb[0].mxu0
          %640 = vdwg.mxu0
          %v641 = vpack.c.bf16 %v636, %v636
          %v642 = vld [vmem:[#allocation6] sm:$0xf]
          %v643 = vld [vmem:[#allocation6 + $0x4] sm:$0xf]
          %v644 = vld [vmem:[#allocation6 + $0x8] sm:$0xf]
          %v645 = vld [vmem:[#allocation6 + $0xc] sm:$0xf]
          %v650 = vunpack.c.l.b16 %v642
          %v651 = vunpack.c.l.b16 %v643
          %v652 = vunpack.c.l.b16 %v644
          %v653 = vunpack.c.l.b16 %v645
          %v654 = vpack.c.b16 %v651, %v650
          %v655 = vpack.c.b16 %v653, %v652
          %658 = vmatprep.subr.bf16.mxu0 0
          %659 = vmatpush1.bf16.msra.mxu0 %v654
          %660 = vmatprep.subr.bf16.mxu0 0
          %661 = vmatpush1.bf16.msra.mxu0 %v655
          %662 = vmatprep.subr.bf16.mxu0 0
          %663 = vmatpush1.bf16.msra.mxu0 0
          %664 = vmatprep.subr.bf16.mxu0 0
          %665 = vmatpush1.bf16.msra.mxu0 0
          %666 = vmatprep.subr.bf16.mxu0 0
          %667 = vmatpush1.bf16.msra.mxu0 0
          %668 = vmatprep.subr.bf16.mxu0 0
          %669 = vmatpush1.bf16.msra.mxu0 0
          %670 = vmatprep.subr.bf16.mxu0 0
          %671 = vmatpush1.bf16.msra.mxu0 0
          %672 = vmatprep.subr.bf16.mxu0 0
          %673 = vmatpush1.bf16.msra.mxu0 0
          %674 = vmatprep.subr.bf16.mxu0 0
          %675 = vmatpush1.bf16.msra.mxu0 0
          %676 = vmatprep.subr.bf16.mxu0 0
          %677 = vmatpush1.bf16.msra.mxu0 0
          %678 = vmatprep.subr.bf16.mxu0 0
          %679 = vmatpush1.bf16.msra.mxu0 0
          %680 = vmatprep.subr.bf16.mxu0 0
          %681 = vmatpush1.bf16.msra.mxu0 0
          %682 = vmatprep.subr.bf16.mxu0 0
          %683 = vmatpush1.bf16.msra.mxu0 0
          %684 = vmatprep.subr.bf16.mxu0 0
          %685 = vmatpush1.bf16.msra.mxu0 0
          %686 = vmatprep.subr.bf16.mxu0 0
          %687 = vmatpush1.bf16.msra.mxu0 0
          %688 = vmatprep.subr.bf16.mxu0 0
          %689 = vmatpush1.bf16.msra.mxu0 0
          %690 = vmatprep.mubr.bf16.mxu0 0
          %691 = vmatmul.mubr.bf16.gmra.mrb[0].mxu0 %v599
          %v692 = vpop.f32.mrb[0].mxu0
          %v693 = vadd.f32 0.0, %v692
          %v694 = vpop.f32.mrb[0].mxu0
          %v695 = vpop.f32.mrb[0].mxu0
          %v696 = vpop.f32.mrb[0].mxu0
          %697 = vdwg.mxu0
          %v698 = vpack.c.bf16 %v693, %v693
          %vm699 = vcmask 60416
          %700 = vst.msk [vmem:[#allocation2] sm:$0xf] %vm699, %v641
          %701 = vst.msk [vmem:[#allocation3] sm:$0xf] %vm699, %v698
          %v703 = vunpack.c.l.b16 %v641
          %v704 = vpack.c.b16 %v703, %v703
          %705 = vrot.lane.b32.xlu0 %v704, 120
          %v706 = vpop.permute.xlu0 %705
          %s708 = scalar_lea.vmem [#allocation2], 4
          %709 = vst.msk [vmem:[%s708] sm:$0xf] %vm699, %v706
          %v711 = vunpack.c.l.b16 %v698
          %v712 = vpack.c.b16 %v711, %v711
          %713 = vrot.lane.b32.xlu0 %v712, 120
          %v714 = vpop.permute.xlu0 %713
          %s716 = scalar_lea.vmem [#allocation3], 4
          %717 = vst.msk [vmem:[%s716] sm:$0xf] %vm699, %v714
          %718 = vrot.lane.b32.xlu0 %v704, 112
          %v719 = vpop.permute.xlu0 %718
          %s721 = scalar_lea.vmem [#allocation2], 8
          %722 = vst.msk [vmem:[%s721] sm:$0xf] %vm699, %v719
          %723 = vrot.lane.b32.xlu0 %v712, 112
          %v724 = vpop.permute.xlu0 %723
          %s726 = scalar_lea.vmem [#allocation3], 8
          %727 = vst.msk [vmem:[%s726] sm:$0xf] %vm699, %v724
          %728 = vrot.lane.b32.xlu0 %v704, 104
          %v729 = vpop.permute.xlu0 %728
          %s731 = scalar_lea.vmem [#allocation2], 12
          %732 = vst.msk [vmem:[%s731] sm:$0xf] %vm699, %v729
          %733 = vrot.lane.b32.xlu0 %v712, 104
          %v734 = vpop.permute.xlu0 %733
          %s736 = scalar_lea.vmem [#allocation3], 12
          %737 = vst.msk [vmem:[%s736] sm:$0xf] %vm699, %v734
        $region100: #{tpu_custom_call.1} parent=75 // pred_fallthru
          _
        %s738 = smul.u32 %s36, 8
        %s739 = scalar_lea.vmem %s543, %s738
        %v740 = vld [vmem:[%s739] sm:$0xff]
        %v741 = vld [vmem:[%s6] sm:$0x1]
        %v742 = vld [vmem:[#allocation11] sm:$0x1]
        %vm743 = vcmask 261120
        %v744 = vsel %vm743, %v740, 0.0
        %745 = vadd.xlane.f32.xlu0 %v744
        %v746 = vpop.xlane.xlu0 %745
        %v747 = vrcp.pop 32.0
        %v748 = vmul.f32 %v746, %v747
        %v749 = vsub.f32 %v740, %v748
        %v750 = vmul.f32 %v749, %v749
        %v751 = vsel %vm743, %v750, 0.0
        %752 = vadd.xlane.f32.xlu0 %v751
        %v753 = vpop.xlane.xlu0 %752
        %v754 = vmul.f32 %v753, %v747
        %v755 = vadd.f32 %v754, 1e-05
        %v756 = vrsqrt.pop %v755
        %v757 = vmul.f32 %v749, %v756
        %v759 = vlaneseq
        %v760 = vshrl.u32 %v759, 7
        %v761 = vsub.s32 0, %v760
        %v762 = vrot.slane %v741, %v761
        %v764 = vmul.f32 %v757, %v762
        %v766 = vlaneseq
        %v767 = vshrl.u32 %v766, 7
        %v768 = vsub.s32 0, %v767
        %v769 = vrot.slane %v742, %v768
        %v771 = vadd.f32 %v764, %v769
        %v772 = vmul.f32 %v771, 0.35355338
        %v773 = vpack.c.bf16 %v772, %v772
        %v774 = vld [vmem:[%s1] sm:$0xf]
        %v775 = vld [vmem:[%s1 + $0x4] sm:$0xf]
        %v776 = vld [vmem:[%s1 + $0x8] sm:$0xf]
        %v777 = vld [vmem:[%s1 + $0xc] sm:$0xf]
        %v782 = vunpack.c.l.b16 %v774
        %v783 = vunpack.c.l.b16 %v775
        %v784 = vunpack.c.l.b16 %v776
        %v785 = vunpack.c.l.b16 %v777
        %v786 = vpack.c.b16 %v783, %v782
        %v787 = vpack.c.b16 %v785, %v784
        %v791 = vsel %vm743, %v773, 0
        %793 = vmatprep.subr.bf16.mxu0 0
        %794 = vmatpush1.bf16.msra.mxu0 %v786
        %795 = vmatprep.subr.bf16.mxu0 0
        %796 = vmatpush1.bf16.msra.mxu0 %v787
        %797 = vmatprep.subr.bf16.mxu0 0
        %798 = vmatpush1.bf16.msra.mxu0 0
        %799 = vmatprep.subr.bf16.mxu0 0
        %800 = vmatpush1.bf16.msra.mxu0 0
        %801 = vmatprep.subr.bf16.mxu0 0
        %802 = vmatpush1.bf16.msra.mxu0 0
        %803 = vmatprep.subr.bf16.mxu0 0
        %804 = vmatpush1.bf16.msra.mxu0 0
        %805 = vmatprep.subr.bf16.mxu0 0
        %806 = vmatpush1.bf16.msra.mxu0 0
        %807 = vmatprep.subr.bf16.mxu0 0
        %808 = vmatpush1.bf16.msra.mxu0 0
        %809 = vmatprep.subr.bf16.mxu0 0
        %810 = vmatpush1.bf16.msra.mxu0 0
        %811 = vmatprep.subr.bf16.mxu0 0
        %812 = vmatpush1.bf16.msra.mxu0 0
        %813 = vmatprep.subr.bf16.mxu0 0
        %814 = vmatpush1.bf16.msra.mxu0 0
        %815 = vmatprep.subr.bf16.mxu0 0
        %816 = vmatpush1.bf16.msra.mxu0 0
        %817 = vmatprep.subr.bf16.mxu0 0
        %818 = vmatpush1.bf16.msra.mxu0 0
        %819 = vmatprep.subr.bf16.mxu0 0
        %820 = vmatpush1.bf16.msra.mxu0 0
        %821 = vmatprep.subr.bf16.mxu0 0
        %822 = vmatpush1.bf16.msra.mxu0 0
        %823 = vmatprep.subr.bf16.mxu0 0
        %824 = vmatpush1.bf16.msra.mxu0 0
        %825 = vmatprep.mubr.bf16.mxu0 0
        %826 = vmatmul.mubr.bf16.gmra.mrb[0].mxu0 %v791
        %v827 = vpop.f32.mrb[0].mxu0
        %v828 = vadd.f32 0.0, %v827
        %v829 = vpop.f32.mrb[0].mxu0
        %v830 = vpop.f32.mrb[0].mxu0
        %v831 = vpop.f32.mrb[0].mxu0
        %832 = vdwg.mxu0
        %v833 = vpack.c.bf16 %v828, %v828
        %vm834 = vcmask 60416
        %835 = vst.msk [vmem:[#allocation4] sm:$0xf] %vm834, %v833
        %v837 = vunpack.c.l.b16 %v833
        %v838 = vpack.c.b16 %v837, %v837
        %839 = vrot.lane.b32.xlu0 %v838, 120
        %v840 = vpop.permute.xlu0 %839
        %s842 = scalar_lea.vmem [#allocation4], 4
        %843 = vst.msk [vmem:[%s842] sm:$0xf] %vm834, %v840
        %844 = vrot.lane.b32.xlu0 %v838, 112
        %v845 = vpop.permute.xlu0 %844
        %s847 = scalar_lea.vmem [#allocation4], 8
        %848 = vst.msk [vmem:[%s847] sm:$0xf] %vm834, %v845
        %849 = vrot.lane.b32.xlu0 %v838, 104
        %v850 = vpop.permute.xlu0 %849
        %s852 = scalar_lea.vmem [#allocation4], 12
        %853 = vst.msk [vmem:[%s852] sm:$0xf] %vm834, %v850
        %v854 = vld [vmem:[#allocation4] sm:$0xf]
        %v855 = vld [vmem:[#allocation4 + $0x4] sm:$0xf]
        %v856 = vld [vmem:[#allocation4 + $0x8] sm:$0xf]
        %v857 = vld [vmem:[#allocation4 + $0xc] sm:$0xf]
        %v858 = vld [vmem:[#allocation2] sm:$0xf]
        %v859 = vld [vmem:[#allocation2 + $0x4] sm:$0xf]
        %v860 = vld [vmem:[#allocation2 + $0x8] sm:$0xf]
        %v861 = vld [vmem:[#allocation2 + $0xc] sm:$0xf]
        %vm862 = vcmask 64512
        %v864 = vsel %vm862, %v854, 0
        %v867 = vsel %vm862, %v858, 0
        %869 = vmatprep.subr.bf16.mxu0 0
        %870 = vmatpush1.bf16.xpose.msra.mxu0 %v867
        %871 = vmatprep.subr.bf16.mxu0 0
        %872 = vmatpush1.bf16.xpose.msra.mxu0 0
        %873 = vmatprep.subr.bf16.mxu0 0
        %874 = vmatpush1.bf16.xpose.msra.mxu0 0
        %875 = vmatprep.subr.bf16.mxu0 0
        %876 = vmatpush1.bf16.xpose.msra.mxu0 0
        %877 = vmatprep.subr.bf16.mxu0 0
        %878 = vmatpush1.bf16.xpose.msra.mxu0 0
        %879 = vmatprep.subr.bf16.mxu0 0
        %880 = vmatpush1.bf16.xpose.msra.mxu0 0
        %881 = vmatprep.subr.bf16.mxu0 0
        %882 = vmatpush1.bf16.xpose.msra.mxu0 0
        %883 = vmatprep.subr.bf16.mxu0 0
        %884 = vmatpush1.bf16.xpose.msra.mxu0 0
        %885 = vmatprep.subr.bf16.mxu0 0
        %886 = vmatpush1.bf16.xpose.msra.mxu0 0
        %887 = vmatprep.subr.bf16.mxu0 0
        %888 = vmatpush1.bf16.xpose.msra.mxu0 0
        %889 = vmatprep.subr.bf16.mxu0 0
        %890 = vmatpush1.bf16.xpose.msra.mxu0 0
        %891 = vmatprep.subr.bf16.mxu0 0
        %892 = vmatpush1.bf16.xpose.msra.mxu0 0
        %893 = vmatprep.subr.bf16.mxu0 0
        %894 = vmatpush1.bf16.xpose.msra.mxu0 0
        %895 = vmatprep.subr.bf16.mxu0 0
        %896 = vmatpush1.bf16.xpose.msra.mxu0 0
        %897 = vmatprep.subr.bf16.mxu0 0
        %898 = vmatpush1.bf16.xpose.msra.mxu0 0
        %899 = vmatprep.subr.bf16.mxu0 0
        %900 = vmatpush1.bf16.xpose.msra.mxu0 0
        %901 = vmatprep.mubr.bf16.mxu0 0
        %902 = vmatmul.mubr.bf16.gmra.mrb[0].mxu0 %v864
        %v903 = vpop.f32.mrb[0].mxu0
        %v904 = vadd.f32 0.0, %v903
        %v905 = vpop.f32.mrb[0].mxu0
        %v906 = vpop.f32.mrb[0].mxu0
        %v907 = vpop.f32.mrb[0].mxu0
        %908 = vdwg.mxu0
        %v910 = vsel %vm862, %v855, 0
        %v913 = vsel %vm862, %v859, 0
        %915 = vmatprep.subr.bf16.mxu0 0
        %916 = vmatpush1.bf16.xpose.msra.mxu0 %v913
        %917 = vmatprep.subr.bf16.mxu0 0
        %918 = vmatpush1.bf16.xpose.msra.mxu0 0
        %919 = vmatprep.subr.bf16.mxu0 0
        %920 = vmatpush1.bf16.xpose.msra.mxu0 0
        %921 = vmatprep.subr.bf16.mxu0 0
        %922 = vmatpush1.bf16.xpose.msra.mxu0 0
        %923 = vmatprep.subr.bf16.mxu0 0
        %924 = vmatpush1.bf16.xpose.msra.mxu0 0
        %925 = vmatprep.subr.bf16.mxu0 0
        %926 = vmatpush1.bf16.xpose.msra.mxu0 0
        %927 = vmatprep.subr.bf16.mxu0 0
        %928 = vmatpush1.bf16.xpose.msra.mxu0 0
        %929 = vmatprep.subr.bf16.mxu0 0
        %930 = vmatpush1.bf16.xpose.msra.mxu0 0
        %931 = vmatprep.subr.bf16.mxu0 0
        %932 = vmatpush1.bf16.xpose.msra.mxu0 0
        %933 = vmatprep.subr.bf16.mxu0 0
        %934 = vmatpush1.bf16.xpose.msra.mxu0 0
        %935 = vmatprep.subr.bf16.mxu0 0
        %936 = vmatpush1.bf16.xpose.msra.mxu0 0
        %937 = vmatprep.subr.bf16.mxu0 0
        %938 = vmatpush1.bf16.xpose.msra.mxu0 0
        %939 = vmatprep.subr.bf16.mxu0 0
        %940 = vmatpush1.bf16.xpose.msra.mxu0 0
        %941 = vmatprep.subr.bf16.mxu0 0
        %942 = vmatpush1.bf16.xpose.msra.mxu0 0
        %943 = vmatprep.subr.bf16.mxu0 0
        %944 = vmatpush1.bf16.xpose.msra.mxu0 0
        %945 = vmatprep.subr.bf16.mxu0 0
        %946 = vmatpush1.bf16.xpose.msra.mxu0 0
        %947 = vmatprep.mubr.bf16.mxu0 0
        %948 = vmatmul.mubr.bf16.gmra.mrb[0].mxu0 %v910
        %v949 = vpop.f32.mrb[0].mxu0
        %v950 = vadd.f32 0.0, %v949
        %v951 = vpop.f32.mrb[0].mxu0
        %v952 = vpop.f32.mrb[0].mxu0
        %v953 = vpop.f32.mrb[0].mxu0
        %954 = vdwg.mxu0
        %v956 = vsel %vm862, %v856, 0
        %v959 = vsel %vm862, %v860, 0
        %961 = vmatprep.subr.bf16.mxu0 0
        %962 = vmatpush1.bf16.xpose.msra.mxu0 %v959
        %963 = vmatprep.subr.bf16.mxu0 0
        %964 = vmatpush1.bf16.xpose.msra.mxu0 0
        %965 = vmatprep.subr.bf16.mxu0 0
        %966 = vmatpush1.bf16.xpose.msra.mxu0 0
        %967 = vmatprep.subr.bf16.mxu0 0
        %968 = vmatpush1.bf16.xpose.msra.mxu0 0
        %969 = vmatprep.subr.bf16.mxu0 0
        %970 = vmatpush1.bf16.xpose.msra.mxu0 0
        %971 = vmatprep.subr.bf16.mxu0 0
        %972 = vmatpush1.bf16.xpose.msra.mxu0 0
        %973 = vmatprep.subr.bf16.mxu0 0
        %974 = vmatpush1.bf16.xpose.msra.mxu0 0
        %975 = vmatprep.subr.bf16.mxu0 0
        %976 = vmatpush1.bf16.xpose.msra.mxu0 0
        %977 = vmatprep.subr.bf16.mxu0 0
        %978 = vmatpush1.bf16.xpose.msra.mxu0 0
        %979 = vmatprep.subr.bf16.mxu0 0
        %980 = vmatpush1.bf16.xpose.msra.mxu0 0
        %981 = vmatprep.subr.bf16.mxu0 0
        %982 = vmatpush1.bf16.xpose.msra.mxu0 0
        %983 = vmatprep.subr.bf16.mxu0 0
        %984 = vmatpush1.bf16.xpose.msra.mxu0 0
        %985 = vmatprep.subr.bf16.mxu0 0
        %986 = vmatpush1.bf16.xpose.msra.mxu0 0
        %987 = vmatprep.subr.bf16.mxu0 0
        %988 = vmatpush1.bf16.xpose.msra.mxu0 0
        %989 = vmatprep.subr.bf16.mxu0 0
        %990 = vmatpush1.bf16.xpose.msra.mxu0 0
        %991 = vmatprep.subr.bf16.mxu0 0
        %992 = vmatpush1.bf16.xpose.msra.mxu0 0
        %993 = vmatprep.mubr.bf16.mxu0 0
        %994 = vmatmul.mubr.bf16.gmra.mrb[0].mxu0 %v956
        %v995 = vpop.f32.mrb[0].mxu0
        %v996 = vadd.f32 0.0, %v995
        %v997 = vpop.f32.mrb[0].mxu0
        %v998 = vpop.f32.mrb[0].mxu0
        %v999 = vpop.f32.mrb[0].mxu0
        %1000 = vdwg.mxu0
        %v1002 = vsel %vm862, %v857, 0
        %v1005 = vsel %vm862, %v861, 0
        %1007 = vmatprep.subr.bf16.mxu0 0
        %1008 = vmatpush1.bf16.xpose.msra.mxu0 %v1005
        %1009 = vmatprep.subr.bf16.mxu0 0
        %1010 = vmatpush1.bf16.xpose.msra.mxu0 0
        %1011 = vmatprep.subr.bf16.mxu0 0
        %1012 = vmatpush1.bf16.xpose.msra.mxu0 0
        %1013 = vmatprep.subr.bf16.mxu0 0
        %1014 = vmatpush1.bf16.xpose.msra.mxu0 0
        %1015 = vmatprep.subr.bf16.mxu0 0
        %1016 = vmatpush1.bf16.xpose.msra.mxu0 0
        %1017 = vmatprep.subr.bf16.mxu0 0
        %1018 = vmatpush1.bf16.xpose.msra.mxu0 0
        %1019 = vmatprep.subr.bf16.mxu0 0
        %1020 = vmatpush1.bf16.xpose.msra.mxu0 0
        %1021 = vmatprep.subr.bf16.mxu0 0
        %1022 = vmatpush1.bf16.xpose.msra.mxu0 0
        %1023 = vmatprep.subr.bf16.mxu0 0
        %1024 = vmatpush1.bf16.xpose.msra.mxu0 0
        %1025 = vmatprep.subr.bf16.mxu0 0
        %1026 = vmatpush1.bf16.xpose.msra.mxu0 0
        %1027 = vmatprep.subr.bf16.mxu0 0
        %1028 = vmatpush1.bf16.xpose.msra.mxu0 0
        %1029 = vmatprep.subr.bf16.mxu0 0
        %1030 = vmatpush1.bf16.xpose.msra.mxu0 0
        %1031 = vmatprep.subr.bf16.mxu0 0
        %1032 = vmatpush1.bf16.xpose.msra.mxu0 0
        %1033 = vmatprep.subr.bf16.mxu0 0
        %1034 = vmatpush1.bf16.xpose.msra.mxu0 0
        %1035 = vmatprep.subr.bf16.mxu0 0
        %1036 = vmatpush1.bf16.xpose.msra.mxu0 0
        %1037 = vmatprep.subr.bf16.mxu0 0
        %1038 = vmatpush1.bf16.xpose.msra.mxu0 0
        %1039 = vmatprep.mubr.bf16.mxu0 0
        %1040 = vmatmul.mubr.bf16.gmra.mrb[0].mxu0 %v1002
        %v1041 = vpop.f32.mrb[0].mxu0
        %v1042 = vadd.f32 0.0, %v1041
        %v1043 = vpop.f32.mrb[0].mxu0
        %v1044 = vpop.f32.mrb[0].mxu0
        %v1045 = vpop.f32.mrb[0].mxu0
        %1046 = vdwg.mxu0
        %v1047 = vsel %vm862, %v904, -inf
        %1048 = vmax.xlane.f32.xlu0 %v1047
        %v1049 = vpop.xlane.xlu0 %1048
        %v1050 = vsel %vm862, %v950, -inf
        %1051 = vmax.xlane.f32.xlu0 %v1050
        %v1052 = vpop.xlane.xlu0 %1051
        %v1053 = vsel %vm862, %v996, -inf
        %1054 = vmax.xlane.f32.xlu0 %v1053
        %v1055 = vpop.xlane.xlu0 %1054
        %v1056 = vsel %vm862, %v1042, -inf
        %1057 = vmax.xlane.f32.xlu0 %v1056
        %v1058 = vpop.xlane.xlu0 %1057
        %v1059 = vsub.f32 %v904, %v1049
        %v1060 = vsub.f32 %v950, %v1052
        %v1061 = vsub.f32 %v996, %v1055
        %v1062 = vsub.f32 %v1042, %v1058
        %v1063 = vmul.f32 %v1059, 1.442695
        %v1064 = vpow.pop %v1063
        %v1065 = vmul.f32 %v1060, 1.442695
        %v1066 = vpow.pop %v1065
        %v1067 = vmul.f32 %v1061, 1.442695
        %v1068 = vpow.pop %v1067
        %v1069 = vmul.f32 %v1062, 1.442695
        %v1070 = vpow.pop %v1069
        %v1071 = vsel %vm862, %v1064, 0.0
        %1072 = vadd.xlane.f32.xlu0 %v1071
        %v1073 = vpop.xlane.xlu0 %1072
        %v1074 = vsel %vm862, %v1066, 0.0
        %1075 = vadd.xlane.f32.xlu0 %v1074
        %v1076 = vpop.xlane.xlu0 %1075
        %v1077 = vsel %vm862, %v1068, 0.0
        %1078 = vadd.xlane.f32.xlu0 %v1077
        %v1079 = vpop.xlane.xlu0 %1078
        %v1080 = vsel %vm862, %v1070, 0.0
        %1081 = vadd.xlane.f32.xlu0 %v1080
        %v1082 = vpop.xlane.xlu0 %1081
        %v1083 = vpack.c.bf16 %v1064, %v1064
        %v1084 = vpack.c.bf16 %v1066, %v1066
        %v1085 = vpack.c.bf16 %v1068, %v1068
        %v1086 = vpack.c.bf16 %v1070, %v1070
        %v1087 = vld [vmem:[#allocation3] sm:$0xf]
        %v1088 = vld [vmem:[#allocation3 + $0x4] sm:$0xf]
        %v1089 = vld [vmem:[#allocation3 + $0x8] sm:$0xf]
        %v1090 = vld [vmem:[#allocation3 + $0xc] sm:$0xf]
        %v1092 = vsel %vm862, %v1083, 0
        %vm1094 = vcmask 1043456
        %v1096 = vsel %vm1094, %v1087, 0
        %1098 = vmatprep.subr.bf16.mxu0 0
        %1099 = vmatpush1.bf16.msra.mxu0 %v1096
        %1100 = vmatprep.subr.bf16.mxu0 0
        %1101 = vmatpush1.bf16.msra.mxu0 0
        %1102 = vmatprep.subr.bf16.mxu0 0
        %1103 = vmatpush1.bf16.msra.mxu0 0
        %1104 = vmatprep.subr.bf16.mxu0 0
        %1105 = vmatpush1.bf16.msra.mxu0 0
        %1106 = vmatprep.subr.bf16.mxu0 0
        %1107 = vmatpush1.bf16.msra.mxu0 0
        %1108 = vmatprep.subr.bf16.mxu0 0
        %1109 = vmatpush1.bf16.msra.mxu0 0
        %1110 = vmatprep.subr.bf16.mxu0 0
        %1111 = vmatpush1.bf16.msra.mxu0 0
        %1112 = vmatprep.subr.bf16.mxu0 0
        %1113 = vmatpush1.bf16.msra.mxu0 0
        %1114 = vmatprep.subr.bf16.mxu0 0
        %1115 = vmatpush1.bf16.msra.mxu0 0
        %1116 = vmatprep.subr.bf16.mxu0 0
        %1117 = vmatpush1.bf16.msra.mxu0 0
        %1118 = vmatprep.subr.bf16.mxu0 0
        %1119 = vmatpush1.bf16.msra.mxu0 0
        %1120 = vmatprep.subr.bf16.mxu0 0
        %1121 = vmatpush1.bf16.msra.mxu0 0
        %1122 = vmatprep.subr.bf16.mxu0 0
        %1123 = vmatpush1.bf16.msra.mxu0 0
        %1124 = vmatprep.subr.bf16.mxu0 0
        %1125 = vmatpush1.bf16.msra.mxu0 0
        %1126 = vmatprep.subr.bf16.mxu0 0
        %1127 = vmatpush1.bf16.msra.mxu0 0
        %1128 = vmatprep.subr.bf16.mxu0 0
        %1129 = vmatpush1.bf16.msra.mxu0 0
        %1130 = vmatprep.mubr.bf16.mxu0 0
        %1131 = vmatmul.mubr.bf16.gmra.mrb[0].mxu0 %v1092
        %v1132 = vpop.f32.mrb[0].mxu0
        %v1133 = vadd.f32 0.0, %v1132
        %v1134 = vpop.f32.mrb[0].mxu0
        %v1135 = vpop.f32.mrb[0].mxu0
        %v1136 = vpop.f32.mrb[0].mxu0
        %1137 = vdwg.mxu0
        %v1139 = vsel %vm862, %v1084, 0
        %v1142 = vsel %vm1094, %v1088, 0
        %1144 = vmatprep.subr.bf16.mxu0 0
        %1145 = vmatpush1.bf16.msra.mxu0 %v1142
        %1146 = vmatprep.subr.bf16.mxu0 0
        %1147 = vmatpush1.bf16.msra.mxu0 0
        %1148 = vmatprep.subr.bf16.mxu0 0
        %1149 = vmatpush1.bf16.msra.mxu0 0
        %1150 = vmatprep.subr.bf16.mxu0 0
        %1151 = vmatpush1.bf16.msra.mxu0 0
        %1152 = vmatprep.subr.bf16.mxu0 0
        %1153 = vmatpush1.bf16.msra.mxu0 0
        %1154 = vmatprep.subr.bf16.mxu0 0
        %1155 = vmatpush1.bf16.msra.mxu0 0
        %1156 = vmatprep.subr.bf16.mxu0 0
        %1157 = vmatpush1.bf16.msra.mxu0 0
        %1158 = vmatprep.subr.bf16.mxu0 0
        %1159 = vmatpush1.bf16.msra.mxu0 0
        %1160 = vmatprep.subr.bf16.mxu0 0
        %1161 = vmatpush1.bf16.msra.mxu0 0
        %1162 = vmatprep.subr.bf16.mxu0 0
        %1163 = vmatpush1.bf16.msra.mxu0 0
        %1164 = vmatprep.subr.bf16.mxu0 0
        %1165 = vmatpush1.bf16.msra.mxu0 0
        %1166 = vmatprep.subr.bf16.mxu0 0
        %1167 = vmatpush1.bf16.msra.mxu0 0
        %1168 = vmatprep.subr.bf16.mxu0 0
        %1169 = vmatpush1.bf16.msra.mxu0 0
        %1170 = vmatprep.subr.bf16.mxu0 0
        %1171 = vmatpush1.bf16.msra.mxu0 0
        %1172 = vmatprep.subr.bf16.mxu0 0
        %1173 = vmatpush1.bf16.msra.mxu0 0
        %1174 = vmatprep.subr.bf16.mxu0 0
        %1175 = vmatpush1.bf16.msra.mxu0 0
        %1176 = vmatprep.mubr.bf16.mxu0 0
        %1177 = vmatmul.mubr.bf16.gmra.mrb[0].mxu0 %v1139
        %v1178 = vpop.f32.mrb[0].mxu0
        %v1179 = vadd.f32 0.0, %v1178
        %v1180 = vpop.f32.mrb[0].mxu0
        %v1181 = vpop.f32.mrb[0].mxu0
        %v1182 = vpop.f32.mrb[0].mxu0
        %1183 = vdwg.mxu0
        %v1185 = vsel %vm862, %v1085, 0
        %v1188 = vsel %vm1094, %v1089, 0
        %1190 = vmatprep.subr.bf16.mxu0 0
        %1191 = vmatpush1.bf16.msra.mxu0 %v1188
        %1192 = vmatprep.subr.bf16.mxu0 0
        %1193 = vmatpush1.bf16.msra.mxu0 0
        %1194 = vmatprep.subr.bf16.mxu0 0
        %1195 = vmatpush1.bf16.msra.mxu0 0
        %1196 = vmatprep.subr.bf16.mxu0 0
        %1197 = vmatpush1.bf16.msra.mxu0 0
        %1198 = vmatprep.subr.bf16.mxu0 0
        %1199 = vmatpush1.bf16.msra.mxu0 0
        %1200 = vmatprep.subr.bf16.mxu0 0
        %1201 = vmatpush1.bf16.msra.mxu0 0
        %1202 = vmatprep.subr.bf16.mxu0 0
        %1203 = vmatpush1.bf16.msra.mxu0 0
        %1204 = vmatprep.subr.bf16.mxu0 0
        %1205 = vmatpush1.bf16.msra.mxu0 0
        %1206 = vmatprep.subr.bf16.mxu0 0
        %1207 = vmatpush1.bf16.msra.mxu0 0
        %1208 = vmatprep.subr.bf16.mxu0 0
        %1209 = vmatpush1.bf16.msra.mxu0 0
        %1210 = vmatprep.subr.bf16.mxu0 0
        %1211 = vmatpush1.bf16.msra.mxu0 0
        %1212 = vmatprep.subr.bf16.mxu0 0
        %1213 = vmatpush1.bf16.msra.mxu0 0
        %1214 = vmatprep.subr.bf16.mxu0 0
        %1215 = vmatpush1.bf16.msra.mxu0 0
        %1216 = vmatprep.subr.bf16.mxu0 0
        %1217 = vmatpush1.bf16.msra.mxu0 0
        %1218 = vmatprep.subr.bf16.mxu0 0
        %1219 = vmatpush1.bf16.msra.mxu0 0
        %1220 = vmatprep.subr.bf16.mxu0 0
        %1221 = vmatpush1.bf16.msra.mxu0 0
        %1222 = vmatprep.mubr.bf16.mxu0 0
        %1223 = vmatmul.mubr.bf16.gmra.mrb[0].mxu0 %v1185
        %v1224 = vpop.f32.mrb[0].mxu0
        %v1225 = vadd.f32 0.0, %v1224
        %v1226 = vpop.f32.mrb[0].mxu0
        %v1227 = vpop.f32.mrb[0].mxu0
        %v1228 = vpop.f32.mrb[0].mxu0
        %1229 = vdwg.mxu0
        %v1231 = vsel %vm862, %v1086, 0
        %v1234 = vsel %vm1094, %v1090, 0
        %1236 = vmatprep.subr.bf16.mxu0 0
        %1237 = vmatpush1.bf16.msra.mxu0 %v1234
        %1238 = vmatprep.subr.bf16.mxu0 0
        %1239 = vmatpush1.bf16.msra.mxu0 0
        %1240 = vmatprep.subr.bf16.mxu0 0
        %1241 = vmatpush1.bf16.msra.mxu0 0
        %1242 = vmatprep.subr.bf16.mxu0 0
        %1243 = vmatpush1.bf16.msra.mxu0 0
        %1244 = vmatprep.subr.bf16.mxu0 0
        %1245 = vmatpush1.bf16.msra.mxu0 0
        %1246 = vmatprep.subr.bf16.mxu0 0
        %1247 = vmatpush1.bf16.msra.mxu0 0
        %1248 = vmatprep.subr.bf16.mxu0 0
        %1249 = vmatpush1.bf16.msra.mxu0 0
        %1250 = vmatprep.subr.bf16.mxu0 0
        %1251 = vmatpush1.bf16.msra.mxu0 0
        %1252 = vmatprep.subr.bf16.mxu0 0
        %1253 = vmatpush1.bf16.msra.mxu0 0
        %1254 = vmatprep.subr.bf16.mxu0 0
        %1255 = vmatpush1.bf16.msra.mxu0 0
        %1256 = vmatprep.subr.bf16.mxu0 0
        %1257 = vmatpush1.bf16.msra.mxu0 0
        %1258 = vmatprep.subr.bf16.mxu0 0
        %1259 = vmatpush1.bf16.msra.mxu0 0
        %1260 = vmatprep.subr.bf16.mxu0 0
        %1261 = vmatpush1.bf16.msra.mxu0 0
        %1262 = vmatprep.subr.bf16.mxu0 0
        %1263 = vmatpush1.bf16.msra.mxu0 0
        %1264 = vmatprep.subr.bf16.mxu0 0
        %1265 = vmatpush1.bf16.msra.mxu0 0
        %1266 = vmatprep.subr.bf16.mxu0 0
        %1267 = vmatpush1.bf16.msra.mxu0 0
        %1268 = vmatprep.mubr.bf16.mxu0 0
        %1269 = vmatmul.mubr.bf16.gmra.mrb[0].mxu0 %v1231
        %v1270 = vpop.f32.mrb[0].mxu0
        %v1271 = vadd.f32 0.0, %v1270
        %v1272 = vpop.f32.mrb[0].mxu0
        %v1273 = vpop.f32.mrb[0].mxu0
        %v1274 = vpop.f32.mrb[0].mxu0
        %1275 = vdwg.mxu0
        %v1276 = vrcp.pop %v1073
        %v1277 = vrcp.pop %v1076
        %v1278 = vrcp.pop %v1079
        %v1279 = vrcp.pop %v1082
        %v1280 = vmul.f32 %v1133, %v1276
        %v1281 = vmul.f32 %v1179, %v1277
        %v1282 = vmul.f32 %v1225, %v1278
        %v1283 = vmul.f32 %v1271, %v1279
        %v1284 = vpack.c.bf16 %v1280, %v1280
        %1285 = vst.msk [vmem:[#allocation5] sm:$0xf] %vm834, %v1284
        %v1286 = vpack.c.bf16 %v1281, %v1281
        %v1288 = vunpack.c.l.b16 %v1286
        %v1289 = vpack.c.b16 %v1288, %v1288
        %1290 = vrot.lane.b32.xlu0 %v1289, 8
        %v1291 = vpop.permute.xlu0 %1290
        %vm1293 = vcmask 126016
        %1294 = vst.msk [vmem:[#allocation5] sm:$0xf] %vm1293, %v1291
        %v1295 = vpack.c.bf16 %v1282, %v1282
        %v1297 = vunpack.c.l.b16 %v1295
        %v1298 = vpack.c.b16 %v1297, %v1297
        %1299 = vrot.lane.b32.xlu0 %v1298, 16
        %v1300 = vpop.permute.xlu0 %1299
        %vm1302 = vcmask 191616
        %1303 = vst.msk [vmem:[#allocation5] sm:$0xf] %vm1302, %v1300
        %v1304 = vpack.c.bf16 %v1283, %v1283
        %v1306 = vunpack.c.l.b16 %v1304
        %v1307 = vpack.c.b16 %v1306, %v1306
        %1308 = vrot.lane.b32.xlu0 %v1307, 24
        %v1309 = vpop.permute.xlu0 %1308
        %vm1311 = vcmask 257216
        %1312 = vst.msk [vmem:[#allocation5] sm:$0xf] %vm1311, %v1309
        %v1313 = vld [vmem:[#allocation5] sm:$0xf]
        %v1314 = vld [vmem:[#allocation9] sm:$0xf]
        %v1315 = vld [vmem:[#allocation9 + $0x4] sm:$0xf]
        %v1316 = vld [vmem:[#allocation9 + $0x8] sm:$0xf]
        %v1317 = vld [vmem:[#allocation9 + $0xc] sm:$0xf]
        %v1318 = vld [vmem:[%s5] sm:$0x1]
        %v1320 = vlaneseq
        %v1321 = vshrl.u32 %v1320, 7
        %v1322 = vsub.s32 0, %v1321
        %v1323 = vrot.slane %v1318, %v1322
        %v1329 = vunpack.c.l.b16 %v1314
        %v1330 = vunpack.c.l.b16 %v1315
        %v1331 = vunpack.c.l.b16 %v1316
        %v1332 = vunpack.c.l.b16 %v1317
        %v1333 = vpack.c.b16 %v1330, %v1329
        %v1334 = vpack.c.b16 %v1332, %v1331
        %v1338 = vsel %vm743, %v1313, 0
        %1340 = vmatprep.subr.bf16.mxu0 0
        %1341 = vmatpush1.bf16.msra.mxu0 %v1333
        %1342 = vmatprep.subr.bf16.mxu0 0
        %1343 = vmatpush1.bf16.msra.mxu0 %v1334
        %1344 = vmatprep.subr.bf16.mxu0 0
        %1345 = vmatpush1.bf16.msra.mxu0 0
        %1346 = vmatprep.subr.bf16.mxu0 0
        %1347 = vmatpush1.bf16.msra.mxu0 0
        %1348 = vmatprep.subr.bf16.mxu0 0
        %1349 = vmatpush1.bf16.msra.mxu0 0
        %1350 = vmatprep.subr.bf16.mxu0 0
        %1351 = vmatpush1.bf16.msra.mxu0 0
        %1352 = vmatprep.subr.bf16.mxu0 0
        %1353 = vmatpush1.bf16.msra.mxu0 0
        %1354 = vmatprep.subr.bf16.mxu0 0
        %1355 = vmatpush1.bf16.msra.mxu0 0
        %1356 = vmatprep.subr.bf16.mxu0 0
        %1357 = vmatpush1.bf16.msra.mxu0 0
        %1358 = vmatprep.subr.bf16.mxu0 0
        %1359 = vmatpush1.bf16.msra.mxu0 0
        %1360 = vmatprep.subr.bf16.mxu0 0
        %1361 = vmatpush1.bf16.msra.mxu0 0
        %1362 = vmatprep.subr.bf16.mxu0 0
        %1363 = vmatpush1.bf16.msra.mxu0 0
        %1364 = vmatprep.subr.bf16.mxu0 0
        %1365 = vmatpush1.bf16.msra.mxu0 0
        %1366 = vmatprep.subr.bf16.mxu0 0
        %1367 = vmatpush1.bf16.msra.mxu0 0
        %1368 = vmatprep.subr.bf16.mxu0 0
        %1369 = vmatpush1.bf16.msra.mxu0 0
        %1370 = vmatprep.subr.bf16.mxu0 0
        %1371 = vmatpush1.bf16.msra.mxu0 0
        %1372 = vmatprep.mubr.bf16.mxu0 0
        %1373 = vmatmul.mubr.bf16.gmra.mrb[0].mxu0 %v1338
        %v1374 = vpop.f32.mrb[0].mxu0
        %v1375 = vadd.f32 %v1323, %v1374
        %v1376 = vpop.f32.mrb[0].mxu0
        %v1377 = vpop.f32.mrb[0].mxu0
        %v1378 = vpop.f32.mrb[0].mxu0
        %1379 = vdwg.mxu0
        %v1380 = vadd.f32 %v740, %v1375
        %v1381 = vld [vmem:[#allocation12] sm:$0x1]
        %v1382 = vld [vmem:[#allocation14] sm:$0x1]
        %v1383 = vsel %vm743, %v1380, 0.0
        %1384 = vadd.xlane.f32.xlu0 %v1383
        %v1385 = vpop.xlane.xlu0 %1384
        %v1386 = vmul.f32 %v1385, %v747
        %v1387 = vsub.f32 %v1380, %v1386
        %v1388 = vmul.f32 %v1387, %v1387
        %v1389 = vsel %vm743, %v1388, 0.0
        %1390 = vadd.xlane.f32.xlu0 %v1389
        %v1391 = vpop.xlane.xlu0 %1390
        %v1392 = vmul.f32 %v1391, %v747
        %v1393 = vadd.f32 %v1392, 1e-05
        %v1394 = vrsqrt.pop %v1393
        %v1395 = vmul.f32 %v1387, %v1394
        %v1397 = vlaneseq
        %v1398 = vshrl.u32 %v1397, 7
        %v1399 = vsub.s32 0, %v1398
        %v1400 = vrot.slane %v1381, %v1399
        %v1402 = vmul.f32 %v1395, %v1400
        %v1404 = vlaneseq
        %v1405 = vshrl.u32 %v1404, 7
        %v1406 = vsub.s32 0, %v1405
        %v1407 = vrot.slane %v1382, %v1406
        %v1409 = vadd.f32 %v1402, %v1407
        %v1410 = vpack.c.bf16 %v1409, %v1409
        %v1411 = vld [vmem:[%s10] sm:$0xf]
        %v1412 = vld [vmem:[%s10 + $0x4] sm:$0xf]
        %v1413 = vld [vmem:[%s10 + $0x8] sm:$0xf]
        %v1414 = vld [vmem:[%s10 + $0xc] sm:$0xf]
        %v1415 = vld [vmem:[%s11] sm:$0x1]
        %v1417 = vlaneseq
        %v1418 = vshrl.u32 %v1417, 7
        %v1419 = vsub.s32 0, %v1418
        %v1420 = vrot.slane %v1415, %v1419
        %v1426 = vunpack.c.l.b16 %v1411
        %v1427 = vunpack.c.l.b16 %v1412
        %v1428 = vunpack.c.l.b16 %v1413
        %v1429 = vunpack.c.l.b16 %v1414
        %v1430 = vpack.c.b16 %v1427, %v1426
        %v1431 = vpack.c.b16 %v1429, %v1428
        %v1435 = vsel %vm743, %v1410, 0
        %1437 = vmatprep.subr.bf16.mxu0 0
        %1438 = vmatpush1.bf16.msra.mxu0 %v1430
        %1439 = vmatprep.subr.bf16.mxu0 0
        %1440 = vmatpush1.bf16.msra.mxu0 %v1431
        %1441 = vmatprep.subr.bf16.mxu0 0
        %1442 = vmatpush1.bf16.msra.mxu0 0
        %1443 = vmatprep.subr.bf16.mxu0 0
        %1444 = vmatpush1.bf16.msra.mxu0 0
        %1445 = vmatprep.subr.bf16.mxu0 0
        %1446 = vmatpush1.bf16.msra.mxu0 0
        %1447 = vmatprep.subr.bf16.mxu0 0
        %1448 = vmatpush1.bf16.msra.mxu0 0
        %1449 = vmatprep.subr.bf16.mxu0 0
        %1450 = vmatpush1.bf16.msra.mxu0 0
        %1451 = vmatprep.subr.bf16.mxu0 0
        %1452 = vmatpush1.bf16.msra.mxu0 0
        %1453 = vmatprep.subr.bf16.mxu0 0
        %1454 = vmatpush1.bf16.msra.mxu0 0
        %1455 = vmatprep.subr.bf16.mxu0 0
        %1456 = vmatpush1.bf16.msra.mxu0 0
        %1457 = vmatprep.subr.bf16.mxu0 0
        %1458 = vmatpush1.bf16.msra.mxu0 0
        %1459 = vmatprep.subr.bf16.mxu0 0
        %1460 = vmatpush1.bf16.msra.mxu0 0
        %1461 = vmatprep.subr.bf16.mxu0 0
        %1462 = vmatpush1.bf16.msra.mxu0 0
        %1463 = vmatprep.subr.bf16.mxu0 0
        %1464 = vmatpush1.bf16.msra.mxu0 0
        %1465 = vmatprep.subr.bf16.mxu0 0
        %1466 = vmatpush1.bf16.msra.mxu0 0
        %1467 = vmatprep.subr.bf16.mxu0 0
        %1468 = vmatpush1.bf16.msra.mxu0 0
        %1469 = vmatprep.mubr.bf16.mxu0 0
        %1470 = vmatmul.mubr.bf16.gmra.mrb[0].mxu0 %v1435
        %v1471 = vpop.f32.mrb[0].mxu0
        %v1472 = vadd.f32 %v1420, %v1471
        %v1473 = vpop.f32.mrb[0].mxu0
        %v1474 = vpop.f32.mrb[0].mxu0
        %v1475 = vpop.f32.mrb[0].mxu0
        %1476 = vdwg.mxu0
        %v1477 = vmul.f32 %v1472, 0.5
        %v1478 = vmul.f32 %v1472, 0.70710677
        %v1479 = verf.f32.pop %v1478
        %v1480 = vadd.f32 %v1479, 1.0
        %v1481 = vmul.f32 %v1477, %v1480
        %v1482 = vpack.c.bf16 %v1481, %v1481
        %v1483 = vld [vmem:[%s12] sm:$0xf]
        %v1484 = vld [vmem:[%s12 + $0x4] sm:$0xf]
        %v1485 = vld [vmem:[%s12 + $0x8] sm:$0xf]
        %v1486 = vld [vmem:[%s12 + $0xc] sm:$0xf]
        %v1487 = vld [vmem:[%s12 + $0x10] sm:$0xf]
        %v1488 = vld [vmem:[%s12 + $0x14] sm:$0xf]
        %v1489 = vld [vmem:[%s12 + $0x18] sm:$0xf]
        %v1490 = vld [vmem:[%s12 + $0x1c] sm:$0xf]
        %v1491 = vld [vmem:[%s13] sm:$0x1]
        %v1493 = vlaneseq
        %v1494 = vshrl.u32 %v1493, 7
        %v1495 = vsub.s32 0, %v1494
        %v1496 = vrot.slane %v1491, %v1495
        %v1506 = vunpack.c.l.b16 %v1483
        %v1507 = vunpack.c.l.b16 %v1484
        %v1508 = vunpack.c.l.b16 %v1485
        %v1509 = vunpack.c.l.b16 %v1486
        %v1510 = vunpack.c.l.b16 %v1487
        %v1511 = vunpack.c.l.b16 %v1488
        %v1512 = vunpack.c.l.b16 %v1489
        %v1513 = vunpack.c.l.b16 %v1490
        %v1514 = vpack.c.b16 %v1507, %v1506
        %v1515 = vpack.c.b16 %v1509, %v1508
        %v1516 = vpack.c.b16 %v1511, %v1510
        %v1517 = vpack.c.b16 %v1513, %v1512
        %vm1522 = vcmask 523264
        %v1524 = vsel %vm1522, %v1482, 0
        %1526 = vmatprep.subr.bf16.mxu0 0
        %1527 = vmatpush1.bf16.msra.mxu0 %v1514
        %1528 = vmatprep.subr.bf16.mxu0 0
        %1529 = vmatpush1.bf16.msra.mxu0 %v1515
        %1530 = vmatprep.subr.bf16.mxu0 0
        %1531 = vmatpush1.bf16.msra.mxu0 %v1516
        %1532 = vmatprep.subr.bf16.mxu0 0
        %1533 = vmatpush1.bf16.msra.mxu0 %v1517
        %1534 = vmatprep.subr.bf16.mxu0 0
        %1535 = vmatpush1.bf16.msra.mxu0 0
        %1536 = vmatprep.subr.bf16.mxu0 0
        %1537 = vmatpush1.bf16.msra.mxu0 0
        %1538 = vmatprep.subr.bf16.mxu0 0
        %1539 = vmatpush1.bf16.msra.mxu0 0
        %1540 = vmatprep.subr.bf16.mxu0 0
        %1541 = vmatpush1.bf16.msra.mxu0 0
        %1542 = vmatprep.subr.bf16.mxu0 0
        %1543 = vmatpush1.bf16.msra.mxu0 0
        %1544 = vmatprep.subr.bf16.mxu0 0
        %1545 = vmatpush1.bf16.msra.mxu0 0
        %1546 = vmatprep.subr.bf16.mxu0 0
        %1547 = vmatpush1.bf16.msra.mxu0 0
        %1548 = vmatprep.subr.bf16.mxu0 0
        %1549 = vmatpush1.bf16.msra.mxu0 0
        %1550 = vmatprep.subr.bf16.mxu0 0
        %1551 = vmatpush1.bf16.msra.mxu0 0
        %1552 = vmatprep.subr.bf16.mxu0 0
        %1553 = vmatpush1.bf16.msra.mxu0 0
        %1554 = vmatprep.subr.bf16.mxu0 0
        %1555 = vmatpush1.bf16.msra.mxu0 0
        %1556 = vmatprep.subr.bf16.mxu0 0
        %1557 = vmatpush1.bf16.msra.mxu0 0
        %1558 = vmatprep.mubr.bf16.mxu0 0
        %1559 = vmatmul.mubr.bf16.gmra.mrb[0].mxu0 %v1524
        %v1560 = vpop.f32.mrb[0].mxu0
        %v1561 = vadd.f32 %v1496, %v1560
        %v1562 = vpop.f32.mrb[0].mxu0
        %v1563 = vpop.f32.mrb[0].mxu0
        %v1564 = vpop.f32.mrb[0].mxu0
        %1565 = vdwg.mxu0
        %v1566 = vadd.f32 %v1380, %v1561
        %1567 = vst.msk [vmem:[%s539] sm:$0xff] %vm743, %v1566
        %s1568 = sand.u32 %s352, 1
        %s1569 = scalar_lea.sflag [#allocation8], %s1568
        %s1570 = sand.u32 %s352, 1
        %s1571 = smul.addr %s1570, 8
        %s1572 = scalar_lea.vmem [#allocation15], %s1571
        // Predicated region
        $region101: #{tpu_custom_call.1} parent=75 // pred_check
          %p1573 = pneg %p362
        $region102: #{tpu_custom_call.1} parent=75 // pred_check_branch
          %1575 = sbr.rel (%p1573) target = $region104
        $region103: #{tpu_custom_call.1} parent=75 // pred_region
          %s1577 = ssub.s32 128, 128
          %1578 = vsyncadd %s1569, %s1577
          %s1579 = sadd.s32 %s36, %s35
          %s1580 = smul.addr %s1579, 128
          %s1581 = scalar_lea.hbm %s14, %s1580
          %s1583 = sshll.u32 %s1572, 4
          %s1584 = int_to_ptr.vmem [resolvable:$true] %s1583
          %1586 = dma.vmem_to_hbm [thread:$0]  %s1584, 128, %s1581, %s1569
        $region104: #{tpu_custom_call.1} parent=75 // pred_fallthru
          _
      $region76: #{tpu_custom_call.1} parent=5 // pred_fallthru
        _
      %p1587 = scmp.le.s32.totalorder 2, %s26
      // Predicated region
      $region105: #{tpu_custom_call.1} parent=5 // pred_check
        %p1588 = pneg %p1587
      $region106: #{tpu_custom_call.1} parent=5 // pred_check_branch
        %1590 = sbr.rel (%p1588) target = $region108
      $region107: #{tpu_custom_call.1} parent=5 // pred_region
        %s1591 = ssub.s32 %s26, 2
        // Predicated region
        $region109: #{tpu_custom_call.1} parent=107 // pred_check
          %p1592 = pneg %p368
        $region110: #{tpu_custom_call.1} parent=107 // pred_check_branch
          %1594 = sbr.rel (%p1592) target = $region112
        $region111: #{tpu_custom_call.1} parent=107 // pred_region
          %s1595 = sand.u32 %s353, 1
          %s1596 = scalar_lea.sflag [#allocation8], %s1595
          %s1597 = sand.u32 %s353, 1
          %s1598 = smul.addr %s1597, 8
          %s1599 = scalar_lea.vmem [#allocation15], %s1598
          %1600 = dma.done %s1596, 128
        $region112: #{tpu_custom_call.1} parent=107 // pred_fallthru
          _
      $region108: #{tpu_custom_call.1} parent=5 // pred_fallthru
        _
    $region6: #{tpu_custom_call.1} parent=1 // loop_footer
      %s30 = sadd.s32 1, %s26
    $region7: #{tpu_custom_call.1} parent=1 // loop_footer_branch
      %25 = sbr.rel target = $region3
    $region8: #{tpu_custom_call.1} parent=1 // loop_exit
      _
    %1601 = vsyncpa [#allocation7], 1
    %s1602 = scalar_lea.sflag [#allocation7], 1
    %1603 = vsyncpa %s1602, 1
    %1604 = vsyncpa [#allocation10], 1
    %1605 = vsyncpa [#allocation13], 1
    %1606 = vsyncpa [#allocation8], 1
    %s1607 = scalar_lea.sflag [#allocation8], 1
    %1608 = vsyncpa %s1607, 1

</llo_original>
